<compile_context>
chip_gen: v5e
topology: v5e:2x2
jax: 0.10.0
libtpu: 0.0.40
codegen_flags: <defaults>
</compile_context>

<pallas_src>
import math
import functools

import jax
import jax.numpy as jnp
from jax import lax
from jax.experimental import pallas as pl
from jax.experimental.pallas import tpu as pltpu


# ----------------------------------------------------------------------------
# Device introspection (generation-aware tiling / dtypes).
# ----------------------------------------------------------------------------
def _device_kind():
    try:
        return jax.devices()[0].device_kind.lower()
    except Exception:
        return ""


def _vmem_capacity_bytes():
    try:
        cap = getattr(pltpu.get_tpu_info(), "vmem_capacity_bytes", None)
        if cap:
            return int(cap)
    except Exception:
        pass
    return (64 << 20) if "v7" in _device_kind() else (128 << 20)


def _has_bf16_eup():
    # bf16 transcendentals (exp) only pay off on v6e / v7x.
    kind = _device_kind()
    return ("v6" in kind) or ("v7" in kind) or ("trillium" in kind)


def _is_v5e():
    kind = _device_kind()
    return ("v5e" in kind) or ("v5 lite" in kind) or ("v5lite" in kind)


def _round_up(x, m):
    return (x + m - 1) // m * m


def _pick_divisor(n, prefs):
    for p in prefs:
        if p <= n and n % p == 0:
            return p
    return n


def _estimate_vmem_bytes(c_in, c_pad, out_c, n_heads, tile_t, chunk_s,
                         exp_bytes, out_bytes):
    """Rough per-step VMEM footprint: pipelined blocks + weights + scratch +
    live softmax intermediates."""
    bf, f32 = 2, 4
    blocks = 2 * c_in * tile_t * bf                  # x tile (double-buffered)
    blocks += 2 * 2 * c_pad * chunk_s * bf           # kv chunk (double-buffered)
    blocks += 2 * out_c * tile_t * out_bytes         # output tile
    weights = 2 * (c_pad * c_in + out_c * c_pad) * bf
    weights += 2 * (c_pad + out_c) * 128 * f32       # biases pad lanes to 128
    scratch = c_pad * tile_t * (bf + f32) + 2 * n_heads * 8 * tile_t * f32
    live = n_heads * chunk_s * tile_t * (f32 + exp_bytes + f32)  # s_t, e, e_f32
    live += c_pad * tile_t * f32                                 # pV result
    return blocks + weights + scratch + live


# ----------------------------------------------------------------------------
# Kernel
# ----------------------------------------------------------------------------
def _flash_mha_kernel(x_ref, kv_ref, wq_ref, bq_ref, wo_ref, bo_ref, o_ref,
                      q_scr, acc_scr, m_scr, l_scr,
                      *, n_heads, k_channels, exp_dtype, compute_dtype):
    """Grid = (B, T_t/tile_t, T_s/chunk_s); online softmax over the chunk axis.

    x_ref:  (1, C_in, tile_t)        bf16  query-side input tile
    kv_ref: (1, 2, H, K, chunk_s)    bf16  pre-projected K/V chunk (bias-free)
    wq_ref: (C, C_in) bf16  Q weight (softmax scale folded in)
    bq_ref: (C, 1)    f32   Q bias (scaled)
    wo_ref: (O, C)    bf16
    bo_ref: (O, 1)    f32   output bias with wo @ bv folded in
    o_ref:  (1, O, tile_t)
    scratch: q (H,K,tile_t) bf16, acc (H,K,tile_t) f32, m / l (H,1,tile_t) f32
    """
    H, K = n_heads, k_channels
    C = H * K
    sc = pl.program_id(2)
    tile_t = o_ref.shape[-1]

    @pl.when(sc == 0)
    def _():
        # Q projection once per (batch, q-tile); scale already folded in.
        q = jnp.dot(wq_ref[...], x_ref[0],
                    preferred_element_type=jnp.float32) + bq_ref[...]
        q_scr[...] = q.astype(compute_dtype).reshape(H, K, tile_t)
        m_scr[...] = jnp.full(m_scr.shape, -jnp.inf, dtype=m_scr.dtype)
        l_scr[...] = jnp.zeros(l_scr.shape, dtype=l_scr.dtype)
        acc_scr[...] = jnp.zeros(acc_scr.shape, dtype=acc_scr.dtype)

    kh = kv_ref[0, 0]          # (H, K, chunk)
    vh = kv_ref[0, 1]          # (H, K, chunk)
    qh = q_scr[...]            # (H, K, tile_t)

    # scores^T[h, s, t] = sum_k kh[h,k,s] * qh[h,k,t]  (T_t stays on lanes)
    s_t = lax.dot_general(kh, qh, (((1,), (1,)), ((0,), (0,))),
                          preferred_element_type=jnp.float32)   # (H, chunk, Tt)

    # TODO(synk): attn_mask / block_length masking, proximal_bias, window_size
    #             relative embeddings and dropout are not implemented (all are
    #             disabled on the default-config forward path).
    m_prev = m_scr[...]                                           # (H, 1, Tt)
    m_new = jnp.maximum(m_prev, jnp.max(s_t, axis=1, keepdims=True))
    alpha = jnp.exp(m_prev - m_new)                               # (H, 1, Tt)
    # bf16 exp on v6e/v7x (EUP throughput); f32 elsewhere.
    e = jnp.exp((s_t - m_new).astype(exp_dtype))                  # (H, chunk, Tt)
    l_scr[...] = alpha * l_scr[...] + jnp.sum(e.astype(jnp.float32),
                                              axis=1, keepdims=True)
    m_scr[...] = m_new
    # Deferred normalization: accumulate unnormalized pV.
    pv = lax.dot_general(vh, e.astype(compute_dtype),
                         (((2,), (1,)), ((0,), (0,))),
                         preferred_element_type=jnp.float32)      # (H, K, Tt)
    acc_scr[...] = alpha * acc_scr[...] + pv

    @pl.when(sc == pl.num_programs(2) - 1)
    def _():
        inv_l = pl.reciprocal(l_scr[...], approx=True)            # (H, 1, Tt)
        attn = (acc_scr[...] * inv_l).reshape(C, tile_t)          # (C, Tt) f32
        out = jnp.dot(wo_ref[...], attn.astype(compute_dtype),
                      preferred_element_type=jnp.float32) + bo_ref[...]
        o_ref[0] = out.astype(o_ref.dtype)


# ----------------------------------------------------------------------------
# Wrapper
# ----------------------------------------------------------------------------
def multi_head_attention(x, c, params, n_heads, *, compute_dtype=jnp.bfloat16):
    """x: (B, C, T_t), c: (B, C, T_s) -> (B, out_channels, T_t)."""
    B, C_in, Tt = x.shape
    _, _, Ts = c.shape
    O = params["wo"].shape[0]
    H = n_heads
    K = C_in // H
    out_dtype = x.dtype

    scale = 1.0 / math.sqrt(K)   # uses the *unpadded* head dim

    # ---- pad the head dim to the sublane packing (layout-clean reshapes) ----
    packing = 16 if jnp.dtype(compute_dtype).itemsize == 2 else 8
    K_pad = _round_up(K, packing)
    C_pad = H * K_pad

    def pad_out_ch(w):                       # (H*K, C_in) -> (H*K_pad, C_in)
        if K_pad == K:
            return w
        w = w.reshape(H, K, C_in)
        return jnp.pad(w, ((0, 0), (0, K_pad - K), (0, 0))).reshape(C_pad, C_in)

    def pad_bias(b):                         # (H*K, 1) -> (H*K_pad, 1)
        if K_pad == K:
            return b
        b = b.reshape(H, K, 1)
        return jnp.pad(b, ((0, 0), (0, K_pad - K), (0, 0))).reshape(C_pad, 1)

    def pad_in_ch(w):                        # (O, H*K) -> (O, H*K_pad)
        if K_pad == K:
            return w
        w = w.reshape(O, H, K)
        return jnp.pad(w, ((0, 0), (0, 0), (0, K_pad - K))).reshape(O, C_pad)

    # Softmax scale folded into Q projection.
    wq = pad_out_ch(params["wq"] * scale).astype(compute_dtype)
    bq = pad_bias(params["bq"] * scale).astype(jnp.float32)
    wo = pad_in_ch(params["wo"]).astype(compute_dtype)
    # bk cancels (s-independent shift inside softmax); bv folds through conv_o
    # because softmax rows sum to 1:  conv_o(attn + bv) = conv_o(attn) + wo@bv.
    bo = (params["bo"] + params["wo"] @ params["bv"]).astype(jnp.float32)

    # ---- K/V projection hoisted out of the kernel (bias-free, exact) -------
    wkv = jnp.concatenate([pad_out_ch(params["wk"]),
                           pad_out_ch(params["wv"])], axis=0)
    kv = jnp.einsum("oc,bct->bot", wkv.astype(compute_dtype),
                    c.astype(compute_dtype),
                    preferred_element_type=jnp.float32)
    kv = kv.astype(compute_dtype).reshape(B, 2, H, K_pad, Ts)

    xc = x.astype(compute_dtype)

    # ---- generation / VMEM-aware tile selection -----------------------------
    exp_dtype = (compute_dtype
                 if (_has_bf16_eup() and compute_dtype == jnp.bfloat16)
                 else jnp.float32)
    vmem_cap = _vmem_capacity_bytes()
    small_core = _is_v5e() or vmem_cap <= (64 << 20)   # v5e scoped 16MiB / v7x 64MiB
    tile_t = _pick_divisor(Tt, [128, 256] if small_core else [256, 128])
    chunk_s = _pick_divisor(Ts, [512, 256, 128])

    exp_bytes = jnp.dtype(exp_dtype).itemsize
    out_bytes = jnp.dtype(out_dtype).itemsize
    budget = int(vmem_cap * 0.7)
    while _estimate_vmem_bytes(C_in, C_pad, O, H, tile_t, chunk_s,
                               exp_bytes, out_bytes) > budget:
        if chunk_s >= 256 and chunk_s % 256 == 0:
            chunk_s //= 2
        elif tile_t >= 256 and tile_t % 256 == 0:
            tile_t //= 2
        else:
            break
    est = _estimate_vmem_bytes(C_in, C_pad, O, H, tile_t, chunk_s,
                               exp_bytes, out_bytes)
    vmem_limit = int(min(max(est * 3 // 2, 32 << 20), int(vmem_cap * 0.95)))

    grid = (B, Tt // tile_t, Ts // chunk_s)

    kernel = functools.partial(_flash_mha_kernel, n_heads=H, k_channels=K_pad,
                               exp_dtype=exp_dtype, compute_dtype=compute_dtype)

    def const_spec(shape):
        # TODO(synk): single-buffer these constant operands via
        #             pipeline_mode=pl.Buffered(1) to reclaim VMEM on v7x.
        return pl.BlockSpec(shape, lambda b, qt, sc: (0,) * len(shape))

    itemsize = jnp.dtype(compute_dtype).itemsize
    flops = B * (2 * C_pad * C_in * Tt          # Q projection
                 + 4 * H * K_pad * Tt * Ts      # QK^T + pV
                 + 2 * O * C_pad * Tt)          # output projection
    transcendentals = B * H * Tt * Ts
    bytes_accessed = (xc.size * itemsize + kv.size * itemsize
                      + B * O * Tt * out_bytes
                      + (wq.size + wo.size) * itemsize
                      + (bq.size + bo.size) * 4)

    return pl.pallas_call(
        kernel,
        out_shape=jax.ShapeDtypeStruct((B, O, Tt), out_dtype),
        grid=grid,
        in_specs=[
            pl.BlockSpec((1, C_in, tile_t), lambda b, qt, sc: (b, 0, qt)),
            pl.BlockSpec((1, 2, H, K_pad, chunk_s),
                         lambda b, qt, sc: (b, 0, 0, 0, sc)),
            const_spec((C_pad, C_in)), const_spec((C_pad, 1)),
            const_spec((O, C_pad)), const_spec((O, 1)),
        ],
        out_specs=pl.BlockSpec((1, O, tile_t), lambda b, qt, sc: (b, 0, qt)),
        scratch_shapes=[
            pltpu.VMEM((H, K_pad, tile_t), compute_dtype),   # q
            pltpu.VMEM((H, K_pad, tile_t), jnp.float32),     # accumulator
            pltpu.VMEM((H, 1, tile_t), jnp.float32),         # running max
            pltpu.VMEM((H, 1, tile_t), jnp.float32),         # running sum
        ],
        compiler_params=pltpu.CompilerParams(
            # KV is hoisted, so batch AND q-tile axes are parallel (megacore /
            # v7x 2 TCs); only the streamed s-chunk axis is sequential.
            dimension_semantics=("parallel", "parallel", "arbitrary"),
            vmem_limit_bytes=vmem_limit),
        cost_estimate=pl.CostEstimate(
            flops=flops, transcendentals=transcendentals,
            bytes_accessed=bytes_accessed),
    )(xc, kv, wq, bq, wo, bo)


# ----------------------------------------------------------------------------
# Params / reference
# ----------------------------------------------------------------------------
def init_params(key, channels, out_channels, *, zero_wo=True):
    """Mirrors the PyTorch __init__: xavier_uniform for conv_q/k/v weights,
    zeros for conv_o weight (override with zero_wo=False for testing), default
    Conv1d uniform(-1/sqrt(fan_in), 1/sqrt(fan_in)) biases."""
    ks = jax.random.split(key, 8)

    def xavier(k, out_c, in_c):
        bound = math.sqrt(6.0 / (in_c + out_c))
        return jax.random.uniform(k, (out_c, in_c), jnp.float32, -bound, bound)

    def conv_bias(k, out_c, fan_in):
        bound = 1.0 / math.sqrt(fan_in)
        return jax.random.uniform(k, (out_c, 1), jnp.float32, -bound, bound)

    wo = (jnp.zeros((out_channels, channels), jnp.float32) if zero_wo
          else xavier(ks[6], out_channels, channels))
    return {
        "wq": xavier(ks[0], channels, channels),
        "bq": conv_bias(ks[1], channels, channels),
        "wk": xavier(ks[2], channels, channels),
        "bk": conv_bias(ks[3], channels, channels),
        "wv": xavier(ks[4], channels, channels),
        "bv": conv_bias(ks[5], channels, channels),
        "wo": wo,
        "bo": conv_bias(ks[7], out_channels, channels),
    }


def reference_jax(x, c, p, n_heads):
    """Pure-JAX f32 reference mirroring the PyTorch math."""
    B, C, Tt = x.shape
    Ts = c.shape[-1]
    K = C // n_heads
    q = jnp.einsum("oc,bct->bot", p["wq"], x) + p["bq"][None]
    k = jnp.einsum("oc,bct->bot", p["wk"], c) + p["bk"][None]
    v = jnp.einsum("oc,bct->bot", p["wv"], c) + p["bv"][None]
    qh = q.reshape(B, n_heads, K, Tt).transpose(0, 1, 3, 2)   # (B,H,Tt,K)
    kh = k.reshape(B, n_heads, K, Ts).transpose(0, 1, 3, 2)   # (B,H,Ts,K)
    vh = v.reshape(B, n_heads, K, Ts).transpose(0, 1, 3, 2)
    scores = jnp.einsum("bhtk,bhsk->bhts", qh / math.sqrt(K), kh)
    attn = jax.nn.softmax(scores, axis=-1)
    out = jnp.einsum("bhts,bhsk->bhtk", attn, vh)              # (B,H,Tt,K)
    out = out.transpose(0, 1, 3, 2).reshape(B, C, Tt)
    return jnp.einsum("oc,bct->bot", p["wo"], out) + p["bo"][None]


if __name__ == "__main__":
    B = 2
    channels = 64
    out_channels = 64
    n_heads = 4        # k_channels = 16 -> matches bf16 sublane packing
    t_t = 384          # query length   -> 3 q tiles of 128
    t_s = 640          # key/val length -> 5 streamed s-chunks of 128

    key = jax.random.PRNGKey(0)
    k_params, k_x, k_c = jax.random.split(key, 3)

    # Random wo in the self-test so the attention/softmax path is actually
    # validated (PyTorch init zeros it, which would make the check trivial).
    params = init_params(k_params, channels, out_channels, zero_wo=False)
    x = jax.random.normal(k_x, (B, channels, t_t), jnp.float32)
    c = jax.random.normal(k_c, (B, channels, t_s), jnp.float32)

    out = multi_head_attention(x, c, params, n_heads)
    out = jax.block_until_ready(out)

    ref = reference_jax(x, c, params, n_heads)
    assert out.shape == (B, out_channels, t_t)
    # bf16 MXU operands + bf16 exp (on v6e/v7x) vs f32 reference.
    assert jnp.allclose(out.astype(jnp.float32), ref, atol=7e-2, rtol=7e-2), \
        "mismatch vs reference"

    print("KERNEL_OK")
</pallas_src>

<mosaic_0001>
module attributes {stable_mosaic.version = 11 : i64} {
  func.func @_flash_mha_kernel(%arg0: i32, %arg1: i32, %arg2: i32, %arg3: memref<1x64x128xbf16, #tpu.memory_space<vmem>>, %arg4: memref<1x2x4x16x128xbf16, #tpu.memory_space<vmem>>, %arg5: memref<64x64xbf16, #tpu.memory_space<vmem>>, %arg6: memref<64x1xf32, #tpu.memory_space<vmem>>, %arg7: memref<64x64xbf16, #tpu.memory_space<vmem>>, %arg8: memref<64x1xf32, #tpu.memory_space<vmem>>, %arg9: memref<1x64x128xf32, #tpu.memory_space<vmem>>, %arg10: memref<4x16x128xbf16, #tpu.memory_space<vmem>>, %arg11: memref<4x16x128xf32, #tpu.memory_space<vmem>>, %arg12: memref<4x1x128xf32, #tpu.memory_space<vmem>>, %arg13: memref<4x1x128xf32, #tpu.memory_space<vmem>>) attributes {dimension_semantics = [#tpu.dimension_semantics<parallel>, #tpu.dimension_semantics<parallel>, #tpu.dimension_semantics<arbitrary>], iteration_bounds = array<i64: 2, 3, 5>, scalar_prefetch = 0 : i64, scratch_operands = 4 : i64, tpu.core_type = #tpu.core_type<tc>, window_params = [{transform_indices = @transform_0, window_bounds = array<i64: 1, 64, 128>}, {transform_indices = @transform_1, window_bounds = array<i64: 1, 2, 4, 16, 128>}, {pipeline_mode = #tpu.pipeline_mode<synchronous>, transform_indices = @transform_2, window_bounds = array<i64: 64, 64>}, {pipeline_mode = #tpu.pipeline_mode<synchronous>, transform_indices = @transform_3, window_bounds = array<i64: 64, 1>}, {pipeline_mode = #tpu.pipeline_mode<synchronous>, transform_indices = @transform_4, window_bounds = array<i64: 64, 64>}, {pipeline_mode = #tpu.pipeline_mode<synchronous>, transform_indices = @transform_5, window_bounds = array<i64: 64, 1>}, {transform_indices = @transform_6, window_bounds = array<i64: 1, 64, 128>}]} {
    %c0_i32 = arith.constant 0 : i32
    %0 = arith.cmpi eq, %arg2, %c0_i32 : i32
    %1 = arith.extui %0 : i1 to i32
    %c0_i32_0 = arith.constant 0 : i32
    %2 = arith.cmpi ne, %1, %c0_i32_0 : i32
    scf.if %2 {
      %c0_34 = arith.constant 0 : index
      %c0_35 = arith.constant 0 : index
      %35 = vector.load %arg5[%c0_34, %c0_35] : memref<64x64xbf16, #tpu.memory_space<vmem>>, vector<64x64xbf16>
      %c0_36 = arith.constant 0 : index
      %c0_37 = arith.constant 0 : index
      %c0_38 = arith.constant 0 : index
      %36 = vector.load %arg3[%c0_36, %c0_37, %c0_38] : memref<1x64x128xbf16, #tpu.memory_space<vmem>>, vector<1x64x128xbf16>
      %37 = vector.shape_cast %36 : vector<1x64x128xbf16> to vector<64x128xbf16>
      %cst_39 = arith.constant dense<0.000000e+00> : vector<64x128xf32>
      %38 = tpu.matmul %35, %37, %cst_39 {dimension_numbers = #tpu.dot_dimension_numbers<[1], [0], [0], [1], [0, 0, 1, 1], [], []>} : vector<64x64xbf16>, vector<64x128xbf16>, vector<64x128xf32> -> vector<64x128xf32>
      %c0_40 = arith.constant 0 : index
      %c0_41 = arith.constant 0 : index
      %39 = vector.load %arg6[%c0_40, %c0_41] : memref<64x1xf32, #tpu.memory_space<vmem>>, vector<64x1xf32>
      %40 = vector.broadcast %39 : vector<64x1xf32> to vector<64x128xf32>
      %41 = arith.addf %38, %40 : vector<64x128xf32>
      %42 = arith.truncf %41 : vector<64x128xf32> to vector<64x128xbf16>
      %43 = vector.shape_cast %42 : vector<64x128xbf16> to vector<4x16x128xbf16>
      %c0_42 = arith.constant 0 : index
      %c0_43 = arith.constant 0 : index
      %c0_44 = arith.constant 0 : index
      %44 = vector.load %arg10[%c0_42, %c0_43, %c0_44] : memref<4x16x128xbf16, #tpu.memory_space<vmem>>, vector<4x16x128xbf16>
      tpu.vector_store %arg10[%c0_42, %c0_43, %c0_44], %43 {strides = array<i32>} : memref<4x16x128xbf16, #tpu.memory_space<vmem>>, vector<4x16x128xbf16>,
      %cst_45 = arith.constant 0xFF800000 : f32
      %45 = vector.broadcast %cst_45 : f32 to vector<4x1x128xf32>
      %c0_46 = arith.constant 0 : index
      %c0_47 = arith.constant 0 : index
      %c0_48 = arith.constant 0 : index
      %46 = vector.load %arg12[%c0_46, %c0_47, %c0_48] : memref<4x1x128xf32, #tpu.memory_space<vmem>>, vector<4x1x128xf32>
      tpu.vector_store %arg12[%c0_46, %c0_47, %c0_48], %45 {strides = array<i32>} : memref<4x1x128xf32, #tpu.memory_space<vmem>>, vector<4x1x128xf32>,
      %cst_49 = arith.constant 0.000000e+00 : f32
      %47 = vector.broadcast %cst_49 : f32 to vector<4x1x128xf32>
      %c0_50 = arith.constant 0 : index
      %c0_51 = arith.constant 0 : index
      %c0_52 = arith.constant 0 : index
      %48 = vector.load %arg13[%c0_50, %c0_51, %c0_52] : memref<4x1x128xf32, #tpu.memory_space<vmem>>, vector<4x1x128xf32>
      tpu.vector_store %arg13[%c0_50, %c0_51, %c0_52], %47 {strides = array<i32>} : memref<4x1x128xf32, #tpu.memory_space<vmem>>, vector<4x1x128xf32>,
      %cst_53 = arith.constant 0.000000e+00 : f32
      %49 = vector.broadcast %cst_53 : f32 to vector<4x16x128xf32>
      %c0_54 = arith.constant 0 : index
      %c0_55 = arith.constant 0 : index
      %c0_56 = arith.constant 0 : index
      %50 = vector.load %arg11[%c0_54, %c0_55, %c0_56] : memref<4x16x128xf32, #tpu.memory_space<vmem>>, vector<4x16x128xf32>
      tpu.vector_store %arg11[%c0_54, %c0_55, %c0_56], %49 {strides = array<i32>} : memref<4x16x128xf32, #tpu.memory_space<vmem>>, vector<4x16x128xf32>,
    } else {
    }
    %c0 = arith.constant 0 : index
    %c0_1 = arith.constant 0 : index
    %c0_2 = arith.constant 0 : index
    %c0_3 = arith.constant 0 : index
    %c0_4 = arith.constant 0 : index
    %3 = vector.load %arg4[%c0, %c0_1, %c0_2, %c0_3, %c0_4] : memref<1x2x4x16x128xbf16, #tpu.memory_space<vmem>>, vector<1x1x4x16x128xbf16>
    %4 = vector.shape_cast %3 : vector<1x1x4x16x128xbf16> to vector<4x16x128xbf16>
    %c0_5 = arith.constant 0 : index
    %c1 = arith.constant 1 : index
    %c0_6 = arith.constant 0 : index
    %c0_7 = arith.constant 0 : index
    %c0_8 = arith.constant 0 : index
    %5 = vector.load %arg4[%c0_5, %c1, %c0_6, %c0_7, %c0_8] : memref<1x2x4x16x128xbf16, #tpu.memory_space<vmem>>, vector<1x1x4x16x128xbf16>
    %6 = vector.shape_cast %5 : vector<1x1x4x16x128xbf16> to vector<4x16x128xbf16>
    %c0_9 = arith.constant 0 : index
    %c0_10 = arith.constant 0 : index
    %c0_11 = arith.constant 0 : index
    %7 = vector.load %arg10[%c0_9, %c0_10, %c0_11] : memref<4x16x128xbf16, #tpu.memory_space<vmem>>, vector<4x16x128xbf16>
    %cst = arith.constant dense<0.000000e+00> : vector<4x128x128xf32>
    %8 = tpu.matmul %4, %7, %cst {dimension_numbers = #tpu.dot_dimension_numbers<[1], [1], [2], [2], [0, 0, 0, 2, 1, 2], [0], [0]>} : vector<4x16x128xbf16>, vector<4x16x128xbf16>, vector<4x128x128xf32> -> vector<4x128x128xf32>
    %c0_12 = arith.constant 0 : index
    %c0_13 = arith.constant 0 : index
    %c0_14 = arith.constant 0 : index
    %9 = vector.load %arg12[%c0_12, %c0_13, %c0_14] : memref<4x1x128xf32, #tpu.memory_space<vmem>>, vector<4x1x128xf32>
    %cst_15 = arith.constant dense<0xFF800000> : vector<4x128xf32>
    %10 = vector.multi_reduction <maximumf>, %8, %cst_15 [1] : vector<4x128x128xf32> to vector<4x128xf32>
    %11 = vector.shape_cast %10 : vector<4x128xf32> to vector<4x1x128xf32>
    %12 = arith.maximumf %9, %11 : vector<4x1x128xf32>
    %13 = arith.subf %9, %12 : vector<4x1x128xf32>
    %14 = math.exp %13 : vector<4x1x128xf32>
    %15 = vector.broadcast %12 : vector<4x1x128xf32> to vector<4x128x128xf32>
    %16 = arith.subf %8, %15 : vector<4x128x128xf32>
    %17 = math.exp %16 : vector<4x128x128xf32>
    %c0_16 = arith.constant 0 : index
    %c0_17 = arith.constant 0 : index
    %c0_18 = arith.constant 0 : index
    %18 = vector.load %arg13[%c0_16, %c0_17, %c0_18] : memref<4x1x128xf32, #tpu.memory_space<vmem>>, vector<4x1x128xf32>
    %19 = arith.mulf %14, %18 : vector<4x1x128xf32>
    %cst_19 = arith.constant dense<0.000000e+00> : vector<4x128xf32>
    %20 = vector.multi_reduction <add>, %17, %cst_19 [1] : vector<4x128x128xf32> to vector<4x128xf32>
    %21 = vector.shape_cast %20 : vector<4x128xf32> to vector<4x1x128xf32>
    %22 = arith.addf %19, %21 : vector<4x1x128xf32>
    %c0_20 = arith.constant 0 : index
    %c0_21 = arith.constant 0 : index
    %c0_22 = arith.constant 0 : index
    %23 = vector.load %arg13[%c0_20, %c0_21, %c0_22] : memref<4x1x128xf32, #tpu.memory_space<vmem>>, vector<4x1x128xf32>
    tpu.vector_store %arg13[%c0_20, %c0_21, %c0_22], %22 {strides = array<i32>} : memref<4x1x128xf32, #tpu.memory_space<vmem>>, vector<4x1x128xf32>,
    %c0_23 = arith.constant 0 : index
    %c0_24 = arith.constant 0 : index
    %c0_25 = arith.constant 0 : index
    %24 = vector.load %arg12[%c0_23, %c0_24, %c0_25] : memref<4x1x128xf32, #tpu.memory_space<vmem>>, vector<4x1x128xf32>
    tpu.vector_store %arg12[%c0_23, %c0_24, %c0_25], %12 {strides = array<i32>} : memref<4x1x128xf32, #tpu.memory_space<vmem>>, vector<4x1x128xf32>,
    %25 = arith.truncf %17 : vector<4x128x128xf32> to vector<4x128x128xbf16>
    %cst_26 = arith.constant dense<0.000000e+00> : vector<4x16x128xf32>
    %26 = tpu.matmul %6, %25, %cst_26 {dimension_numbers = #tpu.dot_dimension_numbers<[2], [1], [1], [2], [0, 0, 0, 1, 1, 2], [0], [0]>} : vector<4x16x128xbf16>, vector<4x128x128xbf16>, vector<4x16x128xf32> -> vector<4x16x128xf32>
    %c0_27 = arith.constant 0 : index
    %c0_28 = arith.constant 0 : index
    %c0_29 = arith.constant 0 : index
    %27 = vector.load %arg11[%c0_27, %c0_28, %c0_29] : memref<4x16x128xf32, #tpu.memory_space<vmem>>, vector<4x16x128xf32>
    %28 = vector.broadcast %14 : vector<4x1x128xf32> to vector<4x16x128xf32>
    %29 = arith.mulf %28, %27 : vector<4x16x128xf32>
    %30 = arith.addf %29, %26 : vector<4x16x128xf32>
    %c0_30 = arith.constant 0 : index
    %c0_31 = arith.constant 0 : index
    %c0_32 = arith.constant 0 : index
    %31 = vector.load %arg11[%c0_30, %c0_31, %c0_32] : memref<4x16x128xf32, #tpu.memory_space<vmem>>, vector<4x16x128xf32>
    tpu.vector_store %arg11[%c0_30, %c0_31, %c0_32], %30 {strides = array<i32>} : memref<4x16x128xf32, #tpu.memory_space<vmem>>, vector<4x16x128xf32>,
    %c4_i32 = arith.constant 4 : i32
    %32 = arith.cmpi eq, %arg2, %c4_i32 : i32
    %33 = arith.extui %32 : i1 to i32
    %c0_i32_33 = arith.constant 0 : i32
    %34 = arith.cmpi ne, %33, %c0_i32_33 : i32
    scf.if %34 {
      %c0_34 = arith.constant 0 : index
      %c0_35 = arith.constant 0 : index
      %c0_36 = arith.constant 0 : index
      %35 = vector.load %arg13[%c0_34, %c0_35, %c0_36] : memref<4x1x128xf32, #tpu.memory_space<vmem>>, vector<4x1x128xf32>
      %36 = tpu.reciprocal %35 {approx = true} : vector<4x1x128xf32> -> vector<4x1x128xf32>
      %c0_37 = arith.constant 0 : index
      %c0_38 = arith.constant 0 : index
      %c0_39 = arith.constant 0 : index
      %37 = vector.load %arg11[%c0_37, %c0_38, %c0_39] : memref<4x16x128xf32, #tpu.memory_space<vmem>>, vector<4x16x128xf32>
      %38 = vector.broadcast %36 : vector<4x1x128xf32> to vector<4x16x128xf32>
      %39 = arith.mulf %37, %38 : vector<4x16x128xf32>
      %40 = vector.shape_cast %39 : vector<4x16x128xf32> to vector<64x128xf32>
      %c0_40 = arith.constant 0 : index
      %c0_41 = arith.constant 0 : index
      %41 = vector.load %arg7[%c0_40, %c0_41] : memref<64x64xbf16, #tpu.memory_space<vmem>>, vector<64x64xbf16>
      %42 = arith.truncf %40 : vector<64x128xf32> to vector<64x128xbf16>
      %cst_42 = arith.constant dense<0.000000e+00> : vector<64x128xf32>
      %43 = tpu.matmul %41, %42, %cst_42 {dimension_numbers = #tpu.dot_dimension_numbers<[1], [0], [0], [1], [0, 0, 1, 1], [], []>} : vector<64x64xbf16>, vector<64x128xbf16>, vector<64x128xf32> -> vector<64x128xf32>
      %c0_43 = arith.constant 0 : index
      %c0_44 = arith.constant 0 : index
      %44 = vector.load %arg8[%c0_43, %c0_44] : memref<64x1xf32, #tpu.memory_space<vmem>>, vector<64x1xf32>
      %45 = vector.broadcast %44 : vector<64x1xf32> to vector<64x128xf32>
      %46 = arith.addf %43, %45 : vector<64x128xf32>
      %c0_45 = arith.constant 0 : index
      %c0_46 = arith.constant 0 : index
      %c0_47 = arith.constant 0 : index
      %47 = vector.load %arg9[%c0_45, %c0_46, %c0_47] : memref<1x64x128xf32, #tpu.memory_space<vmem>>, vector<1x64x128xf32>
      %48 = vector.shape_cast %47 : vector<1x64x128xf32> to vector<64x128xf32>
      %49 = vector.shape_cast %46 : vector<64x128xf32> to vector<1x64x128xf32>
      tpu.vector_store %arg9[%c0_45, %c0_46, %c0_47], %49 {strides = array<i32>} : memref<1x64x128xf32, #tpu.memory_space<vmem>>, vector<1x64x128xf32>,
    } else {
    }
    return
  }
  func.func @transform_0(%arg0: i32, %arg1: i32, %arg2: i32) -> (i32, i32, i32) {
    %c0_i32 = arith.constant 0 : i32
    %c0_i32_0 = arith.constant 0 : i32
    return %arg0, %c0_i32, %arg1 : i32, i32, i32
  }
  func.func @transform_1(%arg0: i32, %arg1: i32, %arg2: i32) -> (i32, i32, i32, i32, i32) {
    %c0_i32 = arith.constant 0 : i32
    %c0_i32_0 = arith.constant 0 : i32
    %c0_i32_1 = arith.constant 0 : i32
    %c0_i32_2 = arith.constant 0 : i32
    return %arg0, %c0_i32, %c0_i32_0, %c0_i32_1, %arg2 : i32, i32, i32, i32, i32
  }
  func.func @transform_2(%arg0: i32, %arg1: i32, %arg2: i32) -> (i32, i32) {
    %c0_i32 = arith.constant 0 : i32
    %c0_i32_0 = arith.constant 0 : i32
    %c0_i32_1 = arith.constant 0 : i32
    return %c0_i32, %c0_i32_0 : i32, i32
  }
  func.func @transform_3(%arg0: i32, %arg1: i32, %arg2: i32) -> (i32, i32) {
    %c0_i32 = arith.constant 0 : i32
    %c0_i32_0 = arith.constant 0 : i32
    %c0_i32_1 = arith.constant 0 : i32
    return %c0_i32, %c0_i32_0 : i32, i32
  }
  func.func @transform_4(%arg0: i32, %arg1: i32, %arg2: i32) -> (i32, i32) {
    %c0_i32 = arith.constant 0 : i32
    %c0_i32_0 = arith.constant 0 : i32
    %c0_i32_1 = arith.constant 0 : i32
    return %c0_i32, %c0_i32_0 : i32, i32
  }
  func.func @transform_5(%arg0: i32, %arg1: i32, %arg2: i32) -> (i32, i32) {
    %c0_i32 = arith.constant 0 : i32
    %c0_i32_0 = arith.constant 0 : i32
    %c0_i32_1 = arith.constant 0 : i32
    return %c0_i32, %c0_i32_0 : i32, i32
  }
  func.func @transform_6(%arg0: i32, %arg1: i32, %arg2: i32) -> (i32, i32, i32) {
    %c0_i32 = arith.constant 0 : i32
    %c0_i32_0 = arith.constant 0 : i32
    return %arg0, %c0_i32, %arg1 : i32, i32, i32
  }
}

</mosaic_0001>

<llo_original>
// kernel: tpu_custom_call.1
$region0: #{tpu_custom_call.1}
  #allocation0 [shape = 'u32[]', space=smem, size = 0x4, offset = 0x4, fixed_abs, tag = 'smem constant byte address 0x4 - core index']
  #allocation1 [shape = 'u32[72,128]{1,0:T(1,128)}', space=vmem, size = 0x9000, scoped, tag = 'internal scratch']
  #allocation2 [shape = 'bf16[4,16,128]{2,1,0:T(8,128)(2,1)}', space=vmem, size = 0x4000, scoped, tag = 'scratch operand']
  #allocation3 [shape = 'f32[4,16,128]{2,1,0:T(8,128)}', space=vmem, size = 0x8000, scoped, tag = 'scratch operand']
  #allocation4 [shape = 'f32[4,1,128]{2,1,0:T(1,128)}', space=vmem, size = 0x800, scoped, tag = 'scratch operand']
  #allocation5 [shape = 'f32[4,1,128]{2,1,0:T(1,128)}', space=vmem, size = 0x800, scoped, tag = 'scratch operand']
  %s0 = inlined_call_operand.hbm [shape: bf16[2,64,384], index: 0, kind: input, shape index: {}]
  %s1 = inlined_call_operand.hbm [shape: bf16[2,2,4,16,640], index: 1, kind: input, shape index: {}]
  %s2 = inlined_call_operand.vmem [shape: bf16[64,64], index: 2, kind: input, shape index: {}]
  %s3 = inlined_call_operand.vmem [shape: f32[64,1], index: 3, kind: input, shape index: {}]
  %s4 = inlined_call_operand.vmem [shape: bf16[64,64], index: 4, kind: input, shape index: {}]
  %s5 = inlined_call_operand.vmem [shape: f32[64,1], index: 5, kind: input, shape index: {}]
  %s6 = inlined_call_operand.hbm [shape: f32[2,64,384], index: 6, kind: output, shape index: {}]
  %s7 = sld [smem:[#allocation0]]
  $region73: #{tpu_custom_call.1} parent=0
    _
  %s9 = ssub.s32 1, %s7
  %s10 = scalar_select 0, %s9, %s7
  $region1: #{tpu_custom_call.1} parent=0
    #allocation6 [shape = 'u8[32768]{0}', space=vmem, size = 0x8000, scoped, tag = 'input window, operand 0']
    #allocation7 [shape = 's32[2]{0}', space=sflag, size = 0x8, scoped, tag = 'scoped memory for tpu_custom_call.1']
    #allocation8 [shape = 's32[2]{0}', space=sflag, size = 0x8, scoped, tag = 'scoped memory for tpu_custom_call.1']
    #allocation9 [shape = 'u8[65536]{0}', space=vmem, size = 0x10000, scoped, tag = 'input window, operand 1']
    #allocation10 [shape = 's32[2]{0}', space=sflag, size = 0x8, scoped, tag = 'scoped memory for tpu_custom_call.1']
    #allocation11 [shape = 'u8[65536]{0}', space=vmem, size = 0x10000, scoped, tag = 'output window, operand 0']
    %11 = vsyncpa [#allocation7], 0
    %s12 = scalar_lea.sflag [#allocation7], 1
    %13 = vsyncpa %s12, 0
    %14 = vsyncpa [#allocation10], 0
    %s15 = scalar_lea.sflag [#allocation10], 1
    %16 = vsyncpa %s15, 0
    %17 = vsyncpa [#allocation8], 0
    %s18 = scalar_lea.sflag [#allocation8], 1
    %19 = vsyncpa %s18, 0
    loop: start=0, step=1, limit=32
    $region2: #{tpu_custom_call.1} parent=1 // loop_pre_header
      _
    $region3: #{tpu_custom_call.1} parent=1 // loop_header
      %s21 = sphi 0, %s25
      %p22 = scmp.ge.s32.totalorder %s21, 32
      %s28 = sphi 0, %s47
      %s29 = sphi 0, %s43
      %s30 = sphi 0, %s39
      %s31 = sphi 0, %s28
      %s32 = sphi 0, %s29
      %s33 = sphi 0, %s30
      %s34 = sphi 0, %s31
      %s35 = sphi 0, %s32
      %s36 = sphi 0, %s33
      %s52 = sphi 0, %s54
      %s55 = sphi 0, %s52
      %s56 = sphi 0, %s55
      %s72 = sphi 0, %s56
      %s80 = sphi 0, %s82
      %s83 = sphi 0, %s80
      %s84 = sphi 0, %s83
      %s100 = sphi 0, %s84
      %s104 = sphi 0, %s104
      %s106 = sphi 0, %s104
      %s107 = sphi 0, %s106
      %s121 = sphi 0, %s107
      %s125 = sphi 0, %s125
      %s127 = sphi 0, %s125
      %s128 = sphi 0, %s127
      %s142 = sphi 0, %s128
      %s146 = sphi 0, %s146
      %s148 = sphi 0, %s146
      %s149 = sphi 0, %s148
      %s163 = sphi 0, %s149
      %s167 = sphi 0, %s167
      %s169 = sphi 0, %s167
      %s170 = sphi 0, %s169
      %s184 = sphi 0, %s170
      %s192 = sphi 0, %s194
      %s195 = sphi 0, %s192
      %s196 = sphi 0, %s195
      %s212 = sphi 0, %s196
    $region4: #{tpu_custom_call.1} parent=1 // loop_header_branch
      %24 = sbr.rel (%p22) target = $region8
    $region5: #{tpu_custom_call.1} parent=1 // loop_body
      %s26 = ssub.s32 %s21, 1
      %s27 = ssub.s32 %s21, 2
      %s37 = sadd.s32 1, %s30
      %p38 = scmp.ge.s32.totalorder %s37, 5
      %s39 = scalar_select %p38, 0, %s37
      %s40 = sadd.s32 1, %s29
      %s41 = scalar_select %p38, %s40, %s29
      %p42 = scmp.ge.s32.totalorder %s41, 3
      %s43 = scalar_select %p42, 0, %s41
      %s44 = sadd.s32 1, %s28
      %s45 = scalar_select %p42, %s44, %s28
      %p46 = scmp.ge.s32.totalorder %s45, 2
      %s47 = scalar_select %p46, 0, %s45
      %s48 = ssub.s32 %s28, %s47
      %s49 = ssub.s32 %s29, %s43
      %s50 = sor.u32 %s48, %s49
      %p51 = scmp.eq.s32.totalorder %s50, 0
      %s53 = sadd.s32 %s52, 1
      %s54 = scalar_select %p51, %s52, %s53
      %p57 = pneg %p51
      %p58 = scmp.eq.s32.totalorder %s21, 29
      %p59 = por %p57, %p58
      %p60 = scmp.ne.s32.totalorder %s52, %s55
      %p61 = scmp.eq.s32.totalorder %s21, 0
      %p62 = por %p60, %p61
      %p63 = scmp.ne.s32.totalorder %s52, %s55
      %p64 = scmp.eq.s32.totalorder %s26, 29
      %p65 = por %p63, %p64
      %p66 = scmp.ne.s32.totalorder %s55, %s56
      %p67 = scmp.eq.s32.totalorder %s26, 0
      %p68 = por %p66, %p67
      %p69 = scmp.ne.s32.totalorder %s55, %s56
      %p70 = scmp.eq.s32.totalorder %s27, 29
      %p71 = por %p69, %p70
      %p73 = scmp.ne.s32.totalorder %s56, %s72
      %p74 = scmp.eq.s32.totalorder %s27, 0
      %p75 = por %p73, %p74
      %s76 = ssub.s32 %s28, %s47
      %s77 = ssub.s32 %s30, %s39
      %s78 = sor.u32 %s76, %s77
      %p79 = scmp.eq.s32.totalorder %s78, 0
      %s81 = sadd.s32 %s80, 1
      %s82 = scalar_select %p79, %s80, %s81
      %p85 = pneg %p79
      %p86 = scmp.eq.s32.totalorder %s21, 29
      %p87 = por %p85, %p86
      %p88 = scmp.ne.s32.totalorder %s80, %s83
      %p89 = scmp.eq.s32.totalorder %s21, 0
      %p90 = por %p88, %p89
      %p91 = scmp.ne.s32.totalorder %s80, %s83
      %p92 = scmp.eq.s32.totalorder %s26, 29
      %p93 = por %p91, %p92
      %p94 = scmp.ne.s32.totalorder %s83, %s84
      %p95 = scmp.eq.s32.totalorder %s26, 0
      %p96 = por %p94, %p95
      %p97 = scmp.ne.s32.totalorder %s83, %s84
      %p98 = scmp.eq.s32.totalorder %s27, 29
      %p99 = por %p97, %p98
      %p101 = scmp.ne.s32.totalorder %s84, %s100
      %p102 = scmp.eq.s32.totalorder %s27, 0
      %p103 = por %p101, %p102
      %s105 = sadd.s32 %s104, 1
      %p108 = scmp.eq.s32.totalorder %s21, 29
      %p109 = scmp.ne.s32.totalorder %s104, %s106
      %p110 = scmp.eq.s32.totalorder %s21, 0
      %p111 = por %p109, %p110
      %p112 = scmp.ne.s32.totalorder %s104, %s106
      %p113 = scmp.eq.s32.totalorder %s26, 29
      %p114 = por %p112, %p113
      %p115 = scmp.ne.s32.totalorder %s106, %s107
      %p116 = scmp.eq.s32.totalorder %s26, 0
      %p117 = por %p115, %p116
      %p118 = scmp.ne.s32.totalorder %s106, %s107
      %p119 = scmp.eq.s32.totalorder %s27, 29
      %p120 = por %p118, %p119
      %p122 = scmp.ne.s32.totalorder %s107, %s121
      %p123 = scmp.eq.s32.totalorder %s27, 0
      %p124 = por %p122, %p123
      %s126 = sadd.s32 %s125, 1
      %p129 = scmp.eq.s32.totalorder %s21, 29
      %p130 = scmp.ne.s32.totalorder %s125, %s127
      %p131 = scmp.eq.s32.totalorder %s21, 0
      %p132 = por %p130, %p131
      %p133 = scmp.ne.s32.totalorder %s125, %s127
      %p134 = scmp.eq.s32.totalorder %s26, 29
      %p135 = por %p133, %p134
      %p136 = scmp.ne.s32.totalorder %s127, %s128
      %p137 = scmp.eq.s32.totalorder %s26, 0
      %p138 = por %p136, %p137
      %p139 = scmp.ne.s32.totalorder %s127, %s128
      %p140 = scmp.eq.s32.totalorder %s27, 29
      %p141 = por %p139, %p140
      %p143 = scmp.ne.s32.totalorder %s128, %s142
      %p144 = scmp.eq.s32.totalorder %s27, 0
      %p145 = por %p143, %p144
      %s147 = sadd.s32 %s146, 1
      %p150 = scmp.eq.s32.totalorder %s21, 29
      %p151 = scmp.ne.s32.totalorder %s146, %s148
      %p152 = scmp.eq.s32.totalorder %s21, 0
      %p153 = por %p151, %p152
      %p154 = scmp.ne.s32.totalorder %s146, %s148
      %p155 = scmp.eq.s32.totalorder %s26, 29
      %p156 = por %p154, %p155
      %p157 = scmp.ne.s32.totalorder %s148, %s149
      %p158 = scmp.eq.s32.totalorder %s26, 0
      %p159 = por %p157, %p158
      %p160 = scmp.ne.s32.totalorder %s148, %s149
      %p161 = scmp.eq.s32.totalorder %s27, 29
      %p162 = por %p160, %p161
      %p164 = scmp.ne.s32.totalorder %s149, %s163
      %p165 = scmp.eq.s32.totalorder %s27, 0
      %p166 = por %p164, %p165
      %s168 = sadd.s32 %s167, 1
      %p171 = scmp.eq.s32.totalorder %s21, 29
      %p172 = scmp.ne.s32.totalorder %s167, %s169
      %p173 = scmp.eq.s32.totalorder %s21, 0
      %p174 = por %p172, %p173
      %p175 = scmp.ne.s32.totalorder %s167, %s169
      %p176 = scmp.eq.s32.totalorder %s26, 29
      %p177 = por %p175, %p176
      %p178 = scmp.ne.s32.totalorder %s169, %s170
      %p179 = scmp.eq.s32.totalorder %s26, 0
      %p180 = por %p178, %p179
      %p181 = scmp.ne.s32.totalorder %s169, %s170
      %p182 = scmp.eq.s32.totalorder %s27, 29
      %p183 = por %p181, %p182
      %p185 = scmp.ne.s32.totalorder %s170, %s184
      %p186 = scmp.eq.s32.totalorder %s27, 0
      %p187 = por %p185, %p186
      %s188 = ssub.s32 %s28, %s47
      %s189 = ssub.s32 %s29, %s43
      %s190 = sor.u32 %s188, %s189
      %p191 = scmp.eq.s32.totalorder %s190, 0
      %s193 = sadd.s32 %s192, 1
      %s194 = scalar_select %p191, %s192, %s193
      %p197 = pneg %p191
      %p198 = scmp.eq.s32.totalorder %s21, 29
      %p199 = por %p197, %p198
      %p200 = scmp.ne.s32.totalorder %s192, %s195
      %p201 = scmp.eq.s32.totalorder %s21, 0
      %p202 = por %p200, %p201
      %p203 = scmp.ne.s32.totalorder %s192, %s195
      %p204 = scmp.eq.s32.totalorder %s26, 29
      %p205 = por %p203, %p204
      %p206 = scmp.ne.s32.totalorder %s195, %s196
      %p207 = scmp.eq.s32.totalorder %s26, 0
      %p208 = por %p206, %p207
      %p209 = scmp.ne.s32.totalorder %s195, %s196
      %p210 = scmp.eq.s32.totalorder %s27, 29
      %p211 = por %p209, %p210
      %p213 = scmp.ne.s32.totalorder %s196, %s212
      %p214 = scmp.eq.s32.totalorder %s27, 0
      %p215 = por %p213, %p214
      %p216 = scmp.le.s32.totalorder 1, %s21
      %p217 = scmp.lt.s32.totalorder %s21, 31
      %p218 = pnand %p216, %p217
      %p219 = pneg %p218
      // Predicated region
      $region9: #{tpu_custom_call.1} parent=5 // pred_check
        _
      $region10: #{tpu_custom_call.1} parent=5 // pred_check_branch
        %221 = sbr.rel (%p218) target = $region12
      $region11: #{tpu_custom_call.1} parent=5 // pred_region
        %s222 = ssub.s32 %s21, 1
        // Predicated region
        $region13: #{tpu_custom_call.1} parent=11 // pred_check
          %p223 = pneg %p117
        $region14: #{tpu_custom_call.1} parent=11 // pred_check_branch
          %225 = sbr.rel (%p223) target = $region16
        $region15: #{tpu_custom_call.1} parent=11 // pred_region
          _
        $region16: #{tpu_custom_call.1} parent=11 // pred_fallthru
          _
        // Predicated region
        $region17: #{tpu_custom_call.1} parent=11 // pred_check
          %p226 = pneg %p138
        $region18: #{tpu_custom_call.1} parent=11 // pred_check_branch
          %228 = sbr.rel (%p226) target = $region20
        $region19: #{tpu_custom_call.1} parent=11 // pred_region
          _
        $region20: #{tpu_custom_call.1} parent=11 // pred_fallthru
          _
        // Predicated region
        $region21: #{tpu_custom_call.1} parent=11 // pred_check
          %p229 = pneg %p159
        $region22: #{tpu_custom_call.1} parent=11 // pred_check_branch
          %231 = sbr.rel (%p229) target = $region24
        $region23: #{tpu_custom_call.1} parent=11 // pred_region
          _
        $region24: #{tpu_custom_call.1} parent=11 // pred_fallthru
          _
        // Predicated region
        $region25: #{tpu_custom_call.1} parent=11 // pred_check
          %p232 = pneg %p180
        $region26: #{tpu_custom_call.1} parent=11 // pred_check_branch
          %234 = sbr.rel (%p232) target = $region28
        $region27: #{tpu_custom_call.1} parent=11 // pred_region
          _
        $region28: #{tpu_custom_call.1} parent=11 // pred_fallthru
          _
      $region12: #{tpu_custom_call.1} parent=5 // pred_fallthru
        _
      %p235 = scmp.lt.s32.totalorder %s21, 30
      // Predicated region
      $region29: #{tpu_custom_call.1} parent=5 // pred_check
        %p236 = pneg %p235
      $region30: #{tpu_custom_call.1} parent=5 // pred_check_branch
        %238 = sbr.rel (%p236) target = $region32
      $region31: #{tpu_custom_call.1} parent=5 // pred_region
        // Predicated region
        $region33: #{tpu_custom_call.1} parent=31 // pred_check
          %p239 = pneg %p62
        $region34: #{tpu_custom_call.1} parent=31 // pred_check_branch
          %241 = sbr.rel (%p239) target = $region36
        $region35: #{tpu_custom_call.1} parent=31 // pred_region
          %s242 = sand.u32 %s52, 1
          %s243 = scalar_lea.sflag [#allocation7], %s242
          %s244 = sand.u32 %s52, 1
          %s245 = smul.addr %s244, 32
          %s246 = scalar_lea.vmem [#allocation6], %s245
          %248 = vsyncadd %s243, 0
          %s249 = smul.addr %s28, 24
          %s250 = sadd.s32 %s29, %s249
          %s251 = smul.addr %s250, 4
          %s252 = scalar_lea.hbm %s0, %s251
          %s253 = sshll.u32 %s252, 4
          %s254 = int_to_ptr.hbm [resolvable:$true] %s253
          %s255 = sshll.u32 %s246, 4
          %s256 = int_to_ptr.vmem [resolvable:$true] %s255
          %261 = dma.hbm_to_vmem [thread:$0]  %s254, 512, %s256, %s243, 192, 64, 4
        $region36: #{tpu_custom_call.1} parent=31 // pred_fallthru
          _
        // Predicated region
        $region37: #{tpu_custom_call.1} parent=31 // pred_check
          %p262 = pneg %p90
        $region38: #{tpu_custom_call.1} parent=31 // pred_check_branch
          %264 = sbr.rel (%p262) target = $region40
        $region39: #{tpu_custom_call.1} parent=31 // pred_region
          %s265 = sand.u32 %s80, 1
          %s266 = scalar_lea.sflag [#allocation10], %s265
          %s267 = sand.u32 %s80, 1
          %s268 = smul.addr %s267, 64
          %s269 = scalar_lea.vmem [#allocation9], %s268
          %271 = vsyncadd %s266, 0
          %s272 = smul.addr %s28, 80
          %s273 = sadd.s32 %s30, %s272
          %s274 = smul.addr %s273, 4
          %s275 = scalar_lea.hbm %s1, %s274
          %s276 = sshll.u32 %s275, 4
          %s277 = int_to_ptr.hbm [resolvable:$true] %s276
          %s278 = sshll.u32 %s269, 4
          %s279 = int_to_ptr.vmem [resolvable:$true] %s278
          %284 = dma.hbm_to_vmem [thread:$0]  %s277, 1024, %s279, %s266, 320, 64, 4
        $region40: #{tpu_custom_call.1} parent=31 // pred_fallthru
          _
      $region32: #{tpu_custom_call.1} parent=5 // pred_fallthru
        _
      %p285 = scmp.le.s32.totalorder 1, %s21
      %p286 = scmp.lt.s32.totalorder %s21, 31
      %p287 = pnand %p285, %p286
      %p288 = pneg %p287
      // Predicated region
      $region41: #{tpu_custom_call.1} parent=5 // pred_check
        _
      $region42: #{tpu_custom_call.1} parent=5 // pred_check_branch
        %290 = sbr.rel (%p287) target = $region44
      $region43: #{tpu_custom_call.1} parent=5 // pred_region
        %s291 = ssub.s32 %s21, 1
        %s292 = sand.u32 %s55, 1
        %s293 = scalar_lea.sflag [#allocation7], %s292
        %s294 = sand.u32 %s55, 1
        %s295 = smul.addr %s294, 32
        %s296 = scalar_lea.vmem [#allocation6], %s295
        // Predicated region
        $region45: #{tpu_custom_call.1} parent=43 // pred_check
          %p297 = pneg %p68
        $region46: #{tpu_custom_call.1} parent=43 // pred_check_branch
          %299 = sbr.rel (%p297) target = $region48
        $region47: #{tpu_custom_call.1} parent=43 // pred_region
          %301 = dma.done %s293, 512
        $region48: #{tpu_custom_call.1} parent=43 // pred_fallthru
          _
        %s302 = sand.u32 %s83, 1
        %s303 = scalar_lea.sflag [#allocation10], %s302
        %s304 = sand.u32 %s83, 1
        %s305 = smul.addr %s304, 64
        %s306 = scalar_lea.vmem [#allocation9], %s305
        // Predicated region
        $region49: #{tpu_custom_call.1} parent=43 // pred_check
          %p307 = pneg %p96
        $region50: #{tpu_custom_call.1} parent=43 // pred_check_branch
          %309 = sbr.rel (%p307) target = $region52
        $region51: #{tpu_custom_call.1} parent=43 // pred_region
          %311 = dma.done %s303, 1024
        $region52: #{tpu_custom_call.1} parent=43 // pred_fallthru
          _
        %s312 = sand.u32 %s55, 1
        %s313 = scalar_lea.sflag [#allocation7], %s312
        %s314 = sand.u32 %s55, 1
        %s315 = smul.addr %s314, 32
        %s316 = scalar_lea.vmem [#allocation6], %s315
        %p317 = pneg %p68
        %p318 = pneg %p65
        %s319 = sand.u32 %s83, 1
        %s320 = scalar_lea.sflag [#allocation10], %s319
        %s321 = sand.u32 %s83, 1
        %s322 = smul.addr %s321, 64
        %s323 = scalar_lea.vmem [#allocation9], %s322
        %p324 = pneg %p96
        %p325 = pneg %p93
        %p326 = pneg %p117
        %p327 = pneg %p114
        %p328 = pneg %p138
        %p329 = pneg %p135
        %p330 = pneg %p159
        %p331 = pneg %p156
        %p332 = pneg %p180
        %p333 = pneg %p177
        %p334 = pneg %p208
        %p335 = pneg %p205
        %s336 = sand.u32 %s195, 1
        %s337 = scalar_lea.sflag [#allocation8], %s336
        %s338 = sand.u32 %s195, 1
        %s339 = smul.addr %s338, 64
        %s340 = scalar_lea.vmem [#allocation11], %s339
        %p342 = scmp.eq.s32.totalorder %s33, 0
        // Predicated region
        $region53: #{tpu_custom_call.1} parent=43 // pred_check
          %p343 = pneg %p342
        $region54: #{tpu_custom_call.1} parent=43 // pred_check_branch
          %345 = sbr.rel (%p343) target = $region56
        $region55: #{tpu_custom_call.1} parent=43 // pred_region
          %v346 = vld [vmem:[%s2] sm:$0xf]
          %v347 = vld [vmem:[%s2 + $0x4] sm:$0xf]
          %v348 = vld [vmem:[%s2 + $0x8] sm:$0xf]
          %v349 = vld [vmem:[%s2 + $0xc] sm:$0xf]
          %v350 = vld [vmem:[%s2 + $0x10] sm:$0xf]
          %v351 = vld [vmem:[%s2 + $0x14] sm:$0xf]
          %v352 = vld [vmem:[%s2 + $0x18] sm:$0xf]
          %v353 = vld [vmem:[%s2 + $0x1c] sm:$0xf]
          %v354 = vld [vmem:[%s296] sm:$0xf]
          %v355 = vld [vmem:[%s296 + $0x4] sm:$0xf]
          %v356 = vld [vmem:[%s296 + $0x8] sm:$0xf]
          %v357 = vld [vmem:[%s296 + $0xc] sm:$0xf]
          %v358 = vld [vmem:[%s296 + $0x10] sm:$0xf]
          %v359 = vld [vmem:[%s296 + $0x14] sm:$0xf]
          %v360 = vld [vmem:[%s296 + $0x18] sm:$0xf]
          %v361 = vld [vmem:[%s296 + $0x1c] sm:$0xf]
          %v362 = vld [vmem:[%s3] sm:$0xff]
          %v363 = vld [vmem:[%s3 + $0x8] sm:$0xff]
          %v364 = vld [vmem:[%s3 + $0x10] sm:$0xff]
          %v365 = vld [vmem:[%s3 + $0x18] sm:$0xff]
          %v366 = vld [vmem:[%s3 + $0x20] sm:$0xff]
          %v367 = vld [vmem:[%s3 + $0x28] sm:$0xff]
          %v368 = vld [vmem:[%s3 + $0x30] sm:$0xff]
          %v369 = vld [vmem:[%s3 + $0x38] sm:$0xff]
          %371 = vset.pattern.permute.xlu0 0
          %372 = vperm.xlu0 %371, %v362
          %v373 = vpop.permute.xlu0 %372
          %376 = vset.pattern.permute.xlu0 0
          %377 = vperm.xlu0 %376, %v363
          %v378 = vpop.permute.xlu0 %377
          %381 = vset.pattern.permute.xlu0 0
          %382 = vperm.xlu0 %381, %v364
          %v383 = vpop.permute.xlu0 %382
          %386 = vset.pattern.permute.xlu0 0
          %387 = vperm.xlu0 %386, %v365
          %v388 = vpop.permute.xlu0 %387
          %391 = vset.pattern.permute.xlu0 0
          %392 = vperm.xlu0 %391, %v366
          %v393 = vpop.permute.xlu0 %392
          %396 = vset.pattern.permute.xlu0 0
          %397 = vperm.xlu0 %396, %v367
          %v398 = vpop.permute.xlu0 %397
          %401 = vset.pattern.permute.xlu0 0
          %402 = vperm.xlu0 %401, %v368
          %v403 = vpop.permute.xlu0 %402
          %406 = vset.pattern.permute.xlu0 0
          %407 = vperm.xlu0 %406, %v369
          %v408 = vpop.permute.xlu0 %407
          %v418 = vunpack.c.l.b16 %v346
          %v419 = vunpack.c.l.b16 %v347
          %v420 = vunpack.c.l.b16 %v348
          %v421 = vunpack.c.l.b16 %v349
          %v422 = vunpack.c.l.b16 %v350
          %v423 = vunpack.c.l.b16 %v351
          %v424 = vunpack.c.l.b16 %v352
          %v425 = vunpack.c.l.b16 %v353
          %v426 = vpack.c.b16 %v419, %v418
          %v427 = vpack.c.b16 %v421, %v420
          %v428 = vpack.c.b16 %v423, %v422
          %v429 = vpack.c.b16 %v425, %v424
          %v438 = vunpack.c.l.b16 %v354
          %v439 = vunpack.c.l.b16 %v355
          %v440 = vunpack.c.l.b16 %v356
          %v441 = vunpack.c.l.b16 %v357
          %v442 = vunpack.c.l.b16 %v358
          %v443 = vunpack.c.l.b16 %v359
          %v444 = vunpack.c.l.b16 %v360
          %v445 = vunpack.c.l.b16 %v361
          %v446 = vpack.c.b16 %v439, %v438
          %v447 = vpack.c.b16 %v441, %v440
          %v448 = vpack.c.b16 %v443, %v442
          %v449 = vpack.c.b16 %v445, %v444
          %vm454 = vcmask 523264
          %v456 = vsel %vm454, %v426, 0
          %v459 = vsel %vm454, %v427, 0
          %v462 = vsel %vm454, %v428, 0
          %v465 = vsel %vm454, %v429, 0
          %467 = vmatpush.bf16.msra.mxu0 0
          %468 = vmatpush.bf16.msra.mxu0 0
          %469 = vmatpush.bf16.msra.mxu0 0
          %470 = vmatpush.bf16.msra.mxu0 0
          %471 = vmatpush.bf16.msra.mxu0 %v449
          %472 = vmatpush.bf16.msra.mxu0 %v448
          %473 = vmatpush.bf16.msra.mxu0 %v447
          %474 = vmatpush.bf16.msra.mxu0 %v446
          %475 = vmatmul.bf16.gmra.mxu0 %v456
          %v476 = vpop.f32.mrf.mxu0
          %v477 = vadd.f32 %v373, %v476
          %v478 = vpop.f32.mrf.mxu0
          %v479 = vadd.f32 %v378, %v478
          %480 = vmatmul.bf16.gmra.mxu0 %v459
          %v481 = vpop.f32.mrf.mxu0
          %v482 = vadd.f32 %v383, %v481
          %v483 = vpop.f32.mrf.mxu0
          %v484 = vadd.f32 %v388, %v483
          %485 = vmatmul.bf16.gmra.mxu0 %v462
          %v486 = vpop.f32.mrf.mxu0
          %v487 = vadd.f32 %v393, %v486
          %v488 = vpop.f32.mrf.mxu0
          %v489 = vadd.f32 %v398, %v488
          %490 = vmatmul.bf16.gmra.mxu0 %v465
          %v491 = vpop.f32.mrf.mxu0
          %v492 = vadd.f32 %v403, %v491
          %v493 = vpop.f32.mrf.mxu0
          %v494 = vadd.f32 %v408, %v493
          %495 = vdwg.mxu0
          %v496 = vpack.c.bf16 %v477, %v477
          %v497 = vpack.c.bf16 %v479, %v479
          %v498 = vpack.c.bf16 %v482, %v482
          %v499 = vpack.c.bf16 %v484, %v484
          %v500 = vpack.c.bf16 %v487, %v487
          %v501 = vpack.c.bf16 %v489, %v489
          %v502 = vpack.c.bf16 %v492, %v492
          %v503 = vpack.c.bf16 %v494, %v494
          %504 = vst [vmem:[#allocation2] sm:$0xf] %v496
          %505 = vst [vmem:[#allocation2 + $0x4] sm:$0xf] %v497
          %506 = vst [vmem:[#allocation2 + $0x8] sm:$0xf] %v498
          %507 = vst [vmem:[#allocation2 + $0xc] sm:$0xf] %v499
          %508 = vst [vmem:[#allocation2 + $0x10] sm:$0xf] %v500
          %509 = vst [vmem:[#allocation2 + $0x14] sm:$0xf] %v501
          %510 = vst [vmem:[#allocation2 + $0x18] sm:$0xf] %v502
          %511 = vst [vmem:[#allocation2 + $0x1c] sm:$0xf] %v503
          %512 = vst [vmem:[#allocation4] sm:$0x1] -inf
          %513 = vst [vmem:[#allocation4 + $0x1] sm:$0x1] -inf
          %514 = vst [vmem:[#allocation4 + $0x2] sm:$0x1] -inf
          %515 = vst [vmem:[#allocation4 + $0x3] sm:$0x1] -inf
          %516 = vst [vmem:[#allocation5] sm:$0x1] 0.0
          %517 = vst [vmem:[#allocation5 + $0x1] sm:$0x1] 0.0
          %518 = vst [vmem:[#allocation5 + $0x2] sm:$0x1] 0.0
          %519 = vst [vmem:[#allocation5 + $0x3] sm:$0x1] 0.0
          %520 = vst [vmem:[#allocation3] sm:$0xff] 0.0
          %521 = vst [vmem:[#allocation3 + $0x8] sm:$0xff] 0.0
          %522 = vst [vmem:[#allocation3 + $0x10] sm:$0xff] 0.0
          %523 = vst [vmem:[#allocation3 + $0x18] sm:$0xff] 0.0
          %524 = vst [vmem:[#allocation3 + $0x20] sm:$0xff] 0.0
          %525 = vst [vmem:[#allocation3 + $0x28] sm:$0xff] 0.0
          %526 = vst [vmem:[#allocation3 + $0x30] sm:$0xff] 0.0
          %527 = vst [vmem:[#allocation3 + $0x38] sm:$0xff] 0.0
        $region56: #{tpu_custom_call.1} parent=43 // pred_fallthru
          _
        %v528 = vld [vmem:[%s306] sm:$0xf]
        %v529 = vld [vmem:[%s306 + $0x4] sm:$0xf]
        %v530 = vld [vmem:[%s306 + $0x8] sm:$0xf]
        %v531 = vld [vmem:[%s306 + $0xc] sm:$0xf]
        %v532 = vld [vmem:[%s306 + $0x10] sm:$0xf]
        %v533 = vld [vmem:[%s306 + $0x14] sm:$0xf]
        %v534 = vld [vmem:[%s306 + $0x18] sm:$0xf]
        %v535 = vld [vmem:[%s306 + $0x1c] sm:$0xf]
        %s536 = scalar_lea.vmem %s306, 32 [#allocation9]
        %v537 = vld [vmem:[%s536] sm:$0xf]
        %v538 = vld [vmem:[%s536 + $0x4] sm:$0xf]
        %v539 = vld [vmem:[%s536 + $0x8] sm:$0xf]
        %v540 = vld [vmem:[%s536 + $0xc] sm:$0xf]
        %v541 = vld [vmem:[%s536 + $0x10] sm:$0xf]
        %v542 = vld [vmem:[%s536 + $0x14] sm:$0xf]
        %v543 = vld [vmem:[%s536 + $0x18] sm:$0xf]
        %v544 = vld [vmem:[%s536 + $0x1c] sm:$0xf]
        %v545 = vld [vmem:[#allocation2] sm:$0xf]
        %v546 = vld [vmem:[#allocation2 + $0x4] sm:$0xf]
        %v547 = vld [vmem:[#allocation2 + $0x8] sm:$0xf]
        %v548 = vld [vmem:[#allocation2 + $0xc] sm:$0xf]
        %v549 = vld [vmem:[#allocation2 + $0x10] sm:$0xf]
        %v550 = vld [vmem:[#allocation2 + $0x14] sm:$0xf]
        %v551 = vld [vmem:[#allocation2 + $0x18] sm:$0xf]
        %v552 = vld [vmem:[#allocation2 + $0x1c] sm:$0xf]
        %v555 = vunpack.c.l.b16 %v528
        %v556 = vunpack.c.l.b16 %v529
        %v557 = vpack.c.b16 %v556, %v555
        %559 = vxpose.xlu0.c.b16.start [1/8] %v557, 128
        %560 = vxpose.xlu0.c.b16.cont [2/8] 0, 128
        %561 = vxpose.xlu0.c.b16.cont [3/8] 0, 128
        %562 = vxpose.xlu0.c.b16.cont [4/8] 0, 128
        %563 = vxpose.xlu0.c.b16.cont [5/8] 0, 128
        %564 = vxpose.xlu0.c.b16.cont [6/8] 0, 128
        %565 = vxpose.xlu0.c.b16.cont [7/8] 0, 128
        %566 = vxpose.xlu0.c.b16.end [8/8] 0, 128
        %v567 = vpop.trf.xlu0
        %v568 = vpop.trf.xlu0
        %v569 = vpop.trf.xlu0
        %v570 = vpop.trf.xlu0
        %v571 = vpop.trf.xlu0
        %v572 = vpop.trf.xlu0
        %v573 = vpop.trf.xlu0
        %v574 = vpop.trf.xlu0
        %v577 = vunpack.c.l.b16 %v545
        %v578 = vunpack.c.l.b16 %v546
        %v579 = vpack.c.b16 %v578, %v577
        %vm581 = vcmask 130048
        %v583 = vsel %vm581, %v567, 0
        %v586 = vsel %vm581, %v568, 0
        %v589 = vsel %vm581, %v569, 0
        %v592 = vsel %vm581, %v570, 0
        %v595 = vsel %vm581, %v571, 0
        %v598 = vsel %vm581, %v572, 0
        %v601 = vsel %vm581, %v573, 0
        %v604 = vsel %vm581, %v574, 0
        %606 = vmatpush.bf16.msra.mxu0 0
        %607 = vmatpush.bf16.msra.mxu0 0
        %608 = vmatpush.bf16.msra.mxu0 0
        %609 = vmatpush.bf16.msra.mxu0 0
        %610 = vmatpush.bf16.msra.mxu0 0
        %611 = vmatpush.bf16.msra.mxu0 0
        %612 = vmatpush.bf16.msra.mxu0 0
        %613 = vmatpush.bf16.msra.mxu0 %v579
        %614 = vmatmul.bf16.gmra.mxu0 %v583
        %v615 = vpop.f32.mrf.mxu0
        %v616 = vadd.f32 0.0, %v615
        %v617 = vpop.f32.mrf.mxu0
        %v618 = vadd.f32 0.0, %v617
        %619 = vmatmul.bf16.gmra.mxu0 %v586
        %v620 = vpop.f32.mrf.mxu0
        %v621 = vadd.f32 0.0, %v620
        %v622 = vpop.f32.mrf.mxu0
        %v623 = vadd.f32 0.0, %v622
        %624 = vmatmul.bf16.gmra.mxu0 %v589
        %v625 = vpop.f32.mrf.mxu0
        %v626 = vadd.f32 0.0, %v625
        %v627 = vpop.f32.mrf.mxu0
        %v628 = vadd.f32 0.0, %v627
        %629 = vmatmul.bf16.gmra.mxu0 %v592
        %v630 = vpop.f32.mrf.mxu0
        %v631 = vadd.f32 0.0, %v630
        %v632 = vpop.f32.mrf.mxu0
        %v633 = vadd.f32 0.0, %v632
        %634 = vmatmul.bf16.gmra.mxu0 %v595
        %v635 = vpop.f32.mrf.mxu0
        %v636 = vadd.f32 0.0, %v635
        %v637 = vpop.f32.mrf.mxu0
        %v638 = vadd.f32 0.0, %v637
        %639 = vmatmul.bf16.gmra.mxu0 %v598
        %v640 = vpop.f32.mrf.mxu0
        %v641 = vadd.f32 0.0, %v640
        %v642 = vpop.f32.mrf.mxu0
        %v643 = vadd.f32 0.0, %v642
        %644 = vmatmul.bf16.gmra.mxu0 %v601
        %v645 = vpop.f32.mrf.mxu0
        %v646 = vadd.f32 0.0, %v645
        %v647 = vpop.f32.mrf.mxu0
        %v648 = vadd.f32 0.0, %v647
        %649 = vmatmul.bf16.gmra.mxu0 %v604
        %v650 = vpop.f32.mrf.mxu0
        %v651 = vadd.f32 0.0, %v650
        %v652 = vpop.f32.mrf.mxu0
        %v653 = vadd.f32 0.0, %v652
        %654 = vdwg.mxu0
        %v657 = vunpack.c.l.b16 %v530
        %v658 = vunpack.c.l.b16 %v531
        %v659 = vpack.c.b16 %v658, %v657
        %661 = vxpose.xlu0.c.b16.start [1/8] %v659, 128
        %662 = vxpose.xlu0.c.b16.cont [2/8] 0, 128
        %663 = vxpose.xlu0.c.b16.cont [3/8] 0, 128
        %664 = vxpose.xlu0.c.b16.cont [4/8] 0, 128
        %665 = vxpose.xlu0.c.b16.cont [5/8] 0, 128
        %666 = vxpose.xlu0.c.b16.cont [6/8] 0, 128
        %667 = vxpose.xlu0.c.b16.cont [7/8] 0, 128
        %668 = vxpose.xlu0.c.b16.end [8/8] 0, 128
        %v669 = vpop.trf.xlu0
        %v670 = vpop.trf.xlu0
        %v671 = vpop.trf.xlu0
        %v672 = vpop.trf.xlu0
        %v673 = vpop.trf.xlu0
        %v674 = vpop.trf.xlu0
        %v675 = vpop.trf.xlu0
        %v676 = vpop.trf.xlu0
        %v679 = vunpack.c.l.b16 %v547
        %v680 = vunpack.c.l.b16 %v548
        %v681 = vpack.c.b16 %v680, %v679
        %v684 = vsel %vm581, %v669, 0
        %v687 = vsel %vm581, %v670, 0
        %v690 = vsel %vm581, %v671, 0
        %v693 = vsel %vm581, %v672, 0
        %v696 = vsel %vm581, %v673, 0
        %v699 = vsel %vm581, %v674, 0
        %v702 = vsel %vm581, %v675, 0
        %v705 = vsel %vm581, %v676, 0
        %707 = vmatpush.bf16.msra.mxu0 0
        %708 = vmatpush.bf16.msra.mxu0 0
        %709 = vmatpush.bf16.msra.mxu0 0
        %710 = vmatpush.bf16.msra.mxu0 0
        %711 = vmatpush.bf16.msra.mxu0 0
        %712 = vmatpush.bf16.msra.mxu0 0
        %713 = vmatpush.bf16.msra.mxu0 0
        %714 = vmatpush.bf16.msra.mxu0 %v681
        %715 = vmatmul.bf16.gmra.mxu0 %v684
        %v716 = vpop.f32.mrf.mxu0
        %v717 = vadd.f32 0.0, %v716
        %v718 = vpop.f32.mrf.mxu0
        %v719 = vadd.f32 0.0, %v718
        %720 = vmatmul.bf16.gmra.mxu0 %v687
        %v721 = vpop.f32.mrf.mxu0
        %v722 = vadd.f32 0.0, %v721
        %v723 = vpop.f32.mrf.mxu0
        %v724 = vadd.f32 0.0, %v723
        %725 = vmatmul.bf16.gmra.mxu0 %v690
        %v726 = vpop.f32.mrf.mxu0
        %v727 = vadd.f32 0.0, %v726
        %v728 = vpop.f32.mrf.mxu0
        %v729 = vadd.f32 0.0, %v728
        %730 = vmatmul.bf16.gmra.mxu0 %v693
        %v731 = vpop.f32.mrf.mxu0
        %v732 = vadd.f32 0.0, %v731
        %v733 = vpop.f32.mrf.mxu0
        %v734 = vadd.f32 0.0, %v733
        %735 = vmatmul.bf16.gmra.mxu0 %v696
        %v736 = vpop.f32.mrf.mxu0
        %v737 = vadd.f32 0.0, %v736
        %v738 = vpop.f32.mrf.mxu0
        %v739 = vadd.f32 0.0, %v738
        %740 = vmatmul.bf16.gmra.mxu0 %v699
        %v741 = vpop.f32.mrf.mxu0
        %v742 = vadd.f32 0.0, %v741
        %v743 = vpop.f32.mrf.mxu0
        %v744 = vadd.f32 0.0, %v743
        %745 = vmatmul.bf16.gmra.mxu0 %v702
        %v746 = vpop.f32.mrf.mxu0
        %v747 = vadd.f32 0.0, %v746
        %v748 = vpop.f32.mrf.mxu0
        %v749 = vadd.f32 0.0, %v748
        %750 = vmatmul.bf16.gmra.mxu0 %v705
        %v751 = vpop.f32.mrf.mxu0
        %v752 = vadd.f32 0.0, %v751
        %v753 = vpop.f32.mrf.mxu0
        %v754 = vadd.f32 0.0, %v753
        %755 = vdwg.mxu0
        %v758 = vunpack.c.l.b16 %v532
        %v759 = vunpack.c.l.b16 %v533
        %v760 = vpack.c.b16 %v759, %v758
        %762 = vxpose.xlu0.c.b16.start [1/8] %v760, 128
        %763 = vxpose.xlu0.c.b16.cont [2/8] 0, 128
        %764 = vxpose.xlu0.c.b16.cont [3/8] 0, 128
        %765 = vxpose.xlu0.c.b16.cont [4/8] 0, 128
        %766 = vxpose.xlu0.c.b16.cont [5/8] 0, 128
        %767 = vxpose.xlu0.c.b16.cont [6/8] 0, 128
        %768 = vxpose.xlu0.c.b16.cont [7/8] 0, 128
        %769 = vxpose.xlu0.c.b16.end [8/8] 0, 128
        %v770 = vpop.trf.xlu0
        %v771 = vpop.trf.xlu0
        %v772 = vpop.trf.xlu0
        %v773 = vpop.trf.xlu0
        %v774 = vpop.trf.xlu0
        %v775 = vpop.trf.xlu0
        %v776 = vpop.trf.xlu0
        %v777 = vpop.trf.xlu0
        %v780 = vunpack.c.l.b16 %v549
        %v781 = vunpack.c.l.b16 %v550
        %v782 = vpack.c.b16 %v781, %v780
        %v785 = vsel %vm581, %v770, 0
        %v788 = vsel %vm581, %v771, 0
        %v791 = vsel %vm581, %v772, 0
        %v794 = vsel %vm581, %v773, 0
        %v797 = vsel %vm581, %v774, 0
        %v800 = vsel %vm581, %v775, 0
        %v803 = vsel %vm581, %v776, 0
        %v806 = vsel %vm581, %v777, 0
        %808 = vmatpush.bf16.msra.mxu0 0
        %809 = vmatpush.bf16.msra.mxu0 0
        %810 = vmatpush.bf16.msra.mxu0 0
        %811 = vmatpush.bf16.msra.mxu0 0
        %812 = vmatpush.bf16.msra.mxu0 0
        %813 = vmatpush.bf16.msra.mxu0 0
        %814 = vmatpush.bf16.msra.mxu0 0
        %815 = vmatpush.bf16.msra.mxu0 %v782
        %816 = vmatmul.bf16.gmra.mxu0 %v785
        %v817 = vpop.f32.mrf.mxu0
        %v818 = vadd.f32 0.0, %v817
        %v819 = vpop.f32.mrf.mxu0
        %v820 = vadd.f32 0.0, %v819
        %821 = vmatmul.bf16.gmra.mxu0 %v788
        %v822 = vpop.f32.mrf.mxu0
        %v823 = vadd.f32 0.0, %v822
        %v824 = vpop.f32.mrf.mxu0
        %v825 = vadd.f32 0.0, %v824
        %826 = vmatmul.bf16.gmra.mxu0 %v791
        %v827 = vpop.f32.mrf.mxu0
        %v828 = vadd.f32 0.0, %v827
        %v829 = vpop.f32.mrf.mxu0
        %v830 = vadd.f32 0.0, %v829
        %831 = vmatmul.bf16.gmra.mxu0 %v794
        %v832 = vpop.f32.mrf.mxu0
        %v833 = vadd.f32 0.0, %v832
        %v834 = vpop.f32.mrf.mxu0
        %v835 = vadd.f32 0.0, %v834
        %836 = vmatmul.bf16.gmra.mxu0 %v797
        %v837 = vpop.f32.mrf.mxu0
        %v838 = vadd.f32 0.0, %v837
        %v839 = vpop.f32.mrf.mxu0
        %v840 = vadd.f32 0.0, %v839
        %841 = vmatmul.bf16.gmra.mxu0 %v800
        %v842 = vpop.f32.mrf.mxu0
        %v843 = vadd.f32 0.0, %v842
        %v844 = vpop.f32.mrf.mxu0
        %v845 = vadd.f32 0.0, %v844
        %846 = vmatmul.bf16.gmra.mxu0 %v803
        %v847 = vpop.f32.mrf.mxu0
        %v848 = vadd.f32 0.0, %v847
        %v849 = vpop.f32.mrf.mxu0
        %v850 = vadd.f32 0.0, %v849
        %851 = vmatmul.bf16.gmra.mxu0 %v806
        %v852 = vpop.f32.mrf.mxu0
        %v853 = vadd.f32 0.0, %v852
        %v854 = vpop.f32.mrf.mxu0
        %v855 = vadd.f32 0.0, %v854
        %856 = vdwg.mxu0
        %v859 = vunpack.c.l.b16 %v534
        %v860 = vunpack.c.l.b16 %v535
        %v861 = vpack.c.b16 %v860, %v859
        %863 = vxpose.xlu0.c.b16.start [1/8] %v861, 128
        %864 = vxpose.xlu0.c.b16.cont [2/8] 0, 128
        %865 = vxpose.xlu0.c.b16.cont [3/8] 0, 128
        %866 = vxpose.xlu0.c.b16.cont [4/8] 0, 128
        %867 = vxpose.xlu0.c.b16.cont [5/8] 0, 128
        %868 = vxpose.xlu0.c.b16.cont [6/8] 0, 128
        %869 = vxpose.xlu0.c.b16.cont [7/8] 0, 128
        %870 = vxpose.xlu0.c.b16.end [8/8] 0, 128
        %v871 = vpop.trf.xlu0
        %v872 = vpop.trf.xlu0
        %v873 = vpop.trf.xlu0
        %v874 = vpop.trf.xlu0
        %v875 = vpop.trf.xlu0
        %v876 = vpop.trf.xlu0
        %v877 = vpop.trf.xlu0
        %v878 = vpop.trf.xlu0
        %v881 = vunpack.c.l.b16 %v551
        %v882 = vunpack.c.l.b16 %v552
        %v883 = vpack.c.b16 %v882, %v881
        %v886 = vsel %vm581, %v871, 0
        %v889 = vsel %vm581, %v872, 0
        %v892 = vsel %vm581, %v873, 0
        %v895 = vsel %vm581, %v874, 0
        %v898 = vsel %vm581, %v875, 0
        %v901 = vsel %vm581, %v876, 0
        %v904 = vsel %vm581, %v877, 0
        %v907 = vsel %vm581, %v878, 0
        %909 = vmatpush.bf16.msra.mxu0 0
        %910 = vmatpush.bf16.msra.mxu0 0
        %911 = vmatpush.bf16.msra.mxu0 0
        %912 = vmatpush.bf16.msra.mxu0 0
        %913 = vmatpush.bf16.msra.mxu0 0
        %914 = vmatpush.bf16.msra.mxu0 0
        %915 = vmatpush.bf16.msra.mxu0 0
        %916 = vmatpush.bf16.msra.mxu0 %v883
        %917 = vmatmul.bf16.gmra.mxu0 %v886
        %v918 = vpop.f32.mrf.mxu0
        %v919 = vadd.f32 0.0, %v918
        %v920 = vpop.f32.mrf.mxu0
        %v921 = vadd.f32 0.0, %v920
        %922 = vmatmul.bf16.gmra.mxu0 %v889
        %v923 = vpop.f32.mrf.mxu0
        %v924 = vadd.f32 0.0, %v923
        %v925 = vpop.f32.mrf.mxu0
        %v926 = vadd.f32 0.0, %v925
        %927 = vmatmul.bf16.gmra.mxu0 %v892
        %v928 = vpop.f32.mrf.mxu0
        %v929 = vadd.f32 0.0, %v928
        %v930 = vpop.f32.mrf.mxu0
        %v931 = vadd.f32 0.0, %v930
        %932 = vmatmul.bf16.gmra.mxu0 %v895
        %v933 = vpop.f32.mrf.mxu0
        %v934 = vadd.f32 0.0, %v933
        %v935 = vpop.f32.mrf.mxu0
        %v936 = vadd.f32 0.0, %v935
        %937 = vmatmul.bf16.gmra.mxu0 %v898
        %v938 = vpop.f32.mrf.mxu0
        %v939 = vadd.f32 0.0, %v938
        %v940 = vpop.f32.mrf.mxu0
        %v941 = vadd.f32 0.0, %v940
        %942 = vmatmul.bf16.gmra.mxu0 %v901
        %v943 = vpop.f32.mrf.mxu0
        %v944 = vadd.f32 0.0, %v943
        %v945 = vpop.f32.mrf.mxu0
        %v946 = vadd.f32 0.0, %v945
        %947 = vmatmul.bf16.gmra.mxu0 %v904
        %v948 = vpop.f32.mrf.mxu0
        %v949 = vadd.f32 0.0, %v948
        %v950 = vpop.f32.mrf.mxu0
        %v951 = vadd.f32 0.0, %v950
        %952 = vmatmul.bf16.gmra.mxu0 %v907
        %v953 = vpop.f32.mrf.mxu0
        %v954 = vadd.f32 0.0, %v953
        %v955 = vpop.f32.mrf.mxu0
        %v956 = vadd.f32 0.0, %v955
        %957 = vdwg.mxu0
        %v958 = vld [vmem:[#allocation4] sm:$0x1]
        %v959 = vld [vmem:[#allocation4 + $0x1] sm:$0x1]
        %v960 = vld [vmem:[#allocation4 + $0x2] sm:$0x1]
        %v961 = vld [vmem:[#allocation4 + $0x3] sm:$0x1]
        %v962 = vmax.f32 %v616, %v618
        %v963 = vmax.f32 %v962, %v621
        %v964 = vmax.f32 %v963, %v623
        %v965 = vmax.f32 %v964, %v626
        %v966 = vmax.f32 %v965, %v628
        %v967 = vmax.f32 %v966, %v631
        %v968 = vmax.f32 %v967, %v633
        %v969 = vmax.f32 %v968, %v636
        %v970 = vmax.f32 %v969, %v638
        %v971 = vmax.f32 %v970, %v641
        %v972 = vmax.f32 %v971, %v643
        %v973 = vmax.f32 %v972, %v646
        %v974 = vmax.f32 %v973, %v648
        %v975 = vmax.f32 %v974, %v651
        %v976 = vmax.f32 %v975, %v653
        %v977 = vrot.slane %v976, 4
        %v978 = vmax.f32 %v976, %v977
        %v979 = vrot.slane %v978, 2
        %v980 = vmax.f32 %v978, %v979
        %v981 = vrot.slane %v980, 1
        %v982 = vmax.f32 %v980, %v981
        %v983 = vmax.f32 %v717, %v719
        %v984 = vmax.f32 %v983, %v722
        %v985 = vmax.f32 %v984, %v724
        %v986 = vmax.f32 %v985, %v727
        %v987 = vmax.f32 %v986, %v729
        %v988 = vmax.f32 %v987, %v732
        %v989 = vmax.f32 %v988, %v734
        %v990 = vmax.f32 %v989, %v737
        %v991 = vmax.f32 %v990, %v739
        %v992 = vmax.f32 %v991, %v742
        %v993 = vmax.f32 %v992, %v744
        %v994 = vmax.f32 %v993, %v747
        %v995 = vmax.f32 %v994, %v749
        %v996 = vmax.f32 %v995, %v752
        %v997 = vmax.f32 %v996, %v754
        %v998 = vrot.slane %v997, 4
        %v999 = vmax.f32 %v997, %v998
        %v1000 = vrot.slane %v999, 2
        %v1001 = vmax.f32 %v999, %v1000
        %v1002 = vrot.slane %v1001, 1
        %v1003 = vmax.f32 %v1001, %v1002
        %v1004 = vmax.f32 %v818, %v820
        %v1005 = vmax.f32 %v1004, %v823
        %v1006 = vmax.f32 %v1005, %v825
        %v1007 = vmax.f32 %v1006, %v828
        %v1008 = vmax.f32 %v1007, %v830
        %v1009 = vmax.f32 %v1008, %v833
        %v1010 = vmax.f32 %v1009, %v835
        %v1011 = vmax.f32 %v1010, %v838
        %v1012 = vmax.f32 %v1011, %v840
        %v1013 = vmax.f32 %v1012, %v843
        %v1014 = vmax.f32 %v1013, %v845
        %v1015 = vmax.f32 %v1014, %v848
        %v1016 = vmax.f32 %v1015, %v850
        %v1017 = vmax.f32 %v1016, %v853
        %v1018 = vmax.f32 %v1017, %v855
        %v1019 = vrot.slane %v1018, 4
        %v1020 = vmax.f32 %v1018, %v1019
        %v1021 = vrot.slane %v1020, 2
        %v1022 = vmax.f32 %v1020, %v1021
        %v1023 = vrot.slane %v1022, 1
        %v1024 = vmax.f32 %v1022, %v1023
        %v1025 = vmax.f32 %v919, %v921
        %v1026 = vmax.f32 %v1025, %v924
        %v1027 = vmax.f32 %v1026, %v926
        %v1028 = vmax.f32 %v1027, %v929
        %v1029 = vmax.f32 %v1028, %v931
        %v1030 = vmax.f32 %v1029, %v934
        %v1031 = vmax.f32 %v1030, %v936
        %v1032 = vmax.f32 %v1031, %v939
        %v1033 = vmax.f32 %v1032, %v941
        %v1034 = vmax.f32 %v1033, %v944
        %v1035 = vmax.f32 %v1034, %v946
        %v1036 = vmax.f32 %v1035, %v949
        %v1037 = vmax.f32 %v1036, %v951
        %v1038 = vmax.f32 %v1037, %v954
        %v1039 = vmax.f32 %v1038, %v956
        %v1040 = vrot.slane %v1039, 4
        %v1041 = vmax.f32 %v1039, %v1040
        %v1042 = vrot.slane %v1041, 2
        %v1043 = vmax.f32 %v1041, %v1042
        %v1044 = vrot.slane %v1043, 1
        %v1045 = vmax.f32 %v1043, %v1044
        %v1046 = vmax.f32 %v958, %v982
        %v1047 = vmax.f32 %v959, %v1003
        %v1048 = vmax.f32 %v960, %v1024
        %v1049 = vmax.f32 %v961, %v1045
        %v1050 = vsub.f32 %v958, %v1046
        %v1051 = vsub.f32 %v959, %v1047
        %v1052 = vsub.f32 %v960, %v1048
        %v1053 = vsub.f32 %v961, %v1049
        %v1054 = vmul.f32 %v1050, 1.442695
        %v1055 = vpow.pop %v1054
        %v1056 = vmul.f32 %v1051, 1.442695
        %v1057 = vpow.pop %v1056
        %v1058 = vmul.f32 %v1052, 1.442695
        %v1059 = vpow.pop %v1058
        %v1060 = vmul.f32 %v1053, 1.442695
        %v1061 = vpow.pop %v1060
        %v1066 = vperm.slane %v1046, 0
        %v1067 = vperm.slane %v1047, 0
        %v1068 = vperm.slane %v1048, 0
        %v1069 = vperm.slane %v1049, 0
        %v1074 = vsub.f32 %v616, %v1066
        %v1075 = vsub.f32 %v618, %v1066
        %v1076 = vsub.f32 %v621, %v1066
        %v1077 = vsub.f32 %v623, %v1066
        %v1078 = vsub.f32 %v626, %v1066
        %v1079 = vsub.f32 %v628, %v1066
        %v1080 = vsub.f32 %v631, %v1066
        %v1081 = vsub.f32 %v633, %v1066
        %v1082 = vsub.f32 %v636, %v1066
        %v1083 = vsub.f32 %v638, %v1066
        %v1084 = vsub.f32 %v641, %v1066
        %v1085 = vsub.f32 %v643, %v1066
        %v1086 = vsub.f32 %v646, %v1066
        %v1087 = vsub.f32 %v648, %v1066
        %v1088 = vsub.f32 %v651, %v1066
        %v1089 = vsub.f32 %v653, %v1066
        %v1090 = vsub.f32 %v717, %v1067
        %v1091 = vsub.f32 %v719, %v1067
        %v1092 = vsub.f32 %v722, %v1067
        %v1093 = vsub.f32 %v724, %v1067
        %v1094 = vsub.f32 %v727, %v1067
        %v1095 = vsub.f32 %v729, %v1067
        %v1096 = vsub.f32 %v732, %v1067
        %v1097 = vsub.f32 %v734, %v1067
        %v1098 = vsub.f32 %v737, %v1067
        %v1099 = vsub.f32 %v739, %v1067
        %v1100 = vsub.f32 %v742, %v1067
        %v1101 = vsub.f32 %v744, %v1067
        %v1102 = vsub.f32 %v747, %v1067
        %v1103 = vsub.f32 %v749, %v1067
        %v1104 = vsub.f32 %v752, %v1067
        %v1105 = vsub.f32 %v754, %v1067
        %v1106 = vsub.f32 %v818, %v1068
        %v1107 = vsub.f32 %v820, %v1068
        %v1108 = vsub.f32 %v823, %v1068
        %v1109 = vsub.f32 %v825, %v1068
        %v1110 = vsub.f32 %v828, %v1068
        %v1111 = vsub.f32 %v830, %v1068
        %v1112 = vsub.f32 %v833, %v1068
        %v1113 = vsub.f32 %v835, %v1068
        %v1114 = vsub.f32 %v838, %v1068
        %v1115 = vsub.f32 %v840, %v1068
        %v1116 = vsub.f32 %v843, %v1068
        %v1117 = vsub.f32 %v845, %v1068
        %v1118 = vsub.f32 %v848, %v1068
        %v1119 = vsub.f32 %v850, %v1068
        %v1120 = vsub.f32 %v853, %v1068
        %v1121 = vsub.f32 %v855, %v1068
        %v1122 = vsub.f32 %v919, %v1069
        %v1123 = vsub.f32 %v921, %v1069
        %v1124 = vsub.f32 %v924, %v1069
        %v1125 = vsub.f32 %v926, %v1069
        %v1126 = vsub.f32 %v929, %v1069
        %v1127 = vsub.f32 %v931, %v1069
        %v1128 = vsub.f32 %v934, %v1069
        %v1129 = vsub.f32 %v936, %v1069
        %v1130 = vsub.f32 %v939, %v1069
        %v1131 = vsub.f32 %v941, %v1069
        %v1132 = vsub.f32 %v944, %v1069
        %v1133 = vsub.f32 %v946, %v1069
        %v1134 = vsub.f32 %v949, %v1069
        %v1135 = vsub.f32 %v951, %v1069
        %v1136 = vsub.f32 %v954, %v1069
        %v1137 = vsub.f32 %v956, %v1069
        %v1138 = vmul.f32 %v1074, 1.442695
        %v1139 = vpow.pop %v1138
        %v1140 = vmul.f32 %v1075, 1.442695
        %v1141 = vpow.pop %v1140
        %v1142 = vmul.f32 %v1076, 1.442695
        %v1143 = vpow.pop %v1142
        %v1144 = vmul.f32 %v1077, 1.442695
        %v1145 = vpow.pop %v1144
        %v1146 = vmul.f32 %v1078, 1.442695
        %v1147 = vpow.pop %v1146
        %v1148 = vmul.f32 %v1079, 1.442695
        %v1149 = vpow.pop %v1148
        %v1150 = vmul.f32 %v1080, 1.442695
        %v1151 = vpow.pop %v1150
        %v1152 = vmul.f32 %v1081, 1.442695
        %v1153 = vpow.pop %v1152
        %v1154 = vmul.f32 %v1082, 1.442695
        %v1155 = vpow.pop %v1154
        %v1156 = vmul.f32 %v1083, 1.442695
        %v1157 = vpow.pop %v1156
        %v1158 = vmul.f32 %v1084, 1.442695
        %v1159 = vpow.pop %v1158
        %v1160 = vmul.f32 %v1085, 1.442695
        %v1161 = vpow.pop %v1160
        %v1162 = vmul.f32 %v1086, 1.442695
        %v1163 = vpow.pop %v1162
        %v1164 = vmul.f32 %v1087, 1.442695
        %v1165 = vpow.pop %v1164
        %v1166 = vmul.f32 %v1088, 1.442695
        %v1167 = vpow.pop %v1166
        %v1168 = vmul.f32 %v1089, 1.442695
        %v1169 = vpow.pop %v1168
        %v1170 = vmul.f32 %v1090, 1.442695
        %v1171 = vpow.pop %v1170
        %v1172 = vmul.f32 %v1091, 1.442695
        %v1173 = vpow.pop %v1172
        %v1174 = vmul.f32 %v1092, 1.442695
        %v1175 = vpow.pop %v1174
        %v1176 = vmul.f32 %v1093, 1.442695
        %v1177 = vpow.pop %v1176
        %v1178 = vmul.f32 %v1094, 1.442695
        %v1179 = vpow.pop %v1178
        %v1180 = vmul.f32 %v1095, 1.442695
        %v1181 = vpow.pop %v1180
        %v1182 = vmul.f32 %v1096, 1.442695
        %v1183 = vpow.pop %v1182
        %v1184 = vmul.f32 %v1097, 1.442695
        %v1185 = vpow.pop %v1184
        %v1186 = vmul.f32 %v1098, 1.442695
        %v1187 = vpow.pop %v1186
        %v1188 = vmul.f32 %v1099, 1.442695
        %v1189 = vpow.pop %v1188
        %v1190 = vmul.f32 %v1100, 1.442695
        %v1191 = vpow.pop %v1190
        %v1192 = vmul.f32 %v1101, 1.442695
        %v1193 = vpow.pop %v1192
        %v1194 = vmul.f32 %v1102, 1.442695
        %v1195 = vpow.pop %v1194
        %v1196 = vmul.f32 %v1103, 1.442695
        %v1197 = vpow.pop %v1196
        %v1198 = vmul.f32 %v1104, 1.442695
        %v1199 = vpow.pop %v1198
        %v1200 = vmul.f32 %v1105, 1.442695
        %v1201 = vpow.pop %v1200
        %v1202 = vmul.f32 %v1106, 1.442695
        %v1203 = vpow.pop %v1202
        %v1204 = vmul.f32 %v1107, 1.442695
        %v1205 = vpow.pop %v1204
        %v1206 = vmul.f32 %v1108, 1.442695
        %v1207 = vpow.pop %v1206
        %v1208 = vmul.f32 %v1109, 1.442695
        %v1209 = vpow.pop %v1208
        %v1210 = vmul.f32 %v1110, 1.442695
        %v1211 = vpow.pop %v1210
        %v1212 = vmul.f32 %v1111, 1.442695
        %v1213 = vpow.pop %v1212
        %v1214 = vmul.f32 %v1112, 1.442695
        %v1215 = vpow.pop %v1214
        %v1216 = vmul.f32 %v1113, 1.442695
        %v1217 = vpow.pop %v1216
        %v1218 = vmul.f32 %v1114, 1.442695
        %v1219 = vpow.pop %v1218
        %v1220 = vmul.f32 %v1115, 1.442695
        %v1221 = vpow.pop %v1220
        %v1222 = vmul.f32 %v1116, 1.442695
        %v1223 = vpow.pop %v1222
        %v1224 = vmul.f32 %v1117, 1.442695
        %v1225 = vpow.pop %v1224
        %v1226 = vmul.f32 %v1118, 1.442695
        %v1227 = vpow.pop %v1226
        %v1228 = vmul.f32 %v1119, 1.442695
        %v1229 = vpow.pop %v1228
        %v1230 = vmul.f32 %v1120, 1.442695
        %v1231 = vpow.pop %v1230
        %v1232 = vmul.f32 %v1121, 1.442695
        %v1233 = vpow.pop %v1232
        %v1234 = vmul.f32 %v1122, 1.442695
        %v1235 = vpow.pop %v1234
        %v1236 = vmul.f32 %v1123, 1.442695
        %v1237 = vpow.pop %v1236
        %v1238 = vmul.f32 %v1124, 1.442695
        %v1239 = vpow.pop %v1238
        %v1240 = vmul.f32 %v1125, 1.442695
        %v1241 = vpow.pop %v1240
        %v1242 = vmul.f32 %v1126, 1.442695
        %v1243 = vpow.pop %v1242
        %v1244 = vmul.f32 %v1127, 1.442695
        %v1245 = vpow.pop %v1244
        %v1246 = vmul.f32 %v1128, 1.442695
        %v1247 = vpow.pop %v1246
        %v1248 = vmul.f32 %v1129, 1.442695
        %v1249 = vpow.pop %v1248
        %v1250 = vmul.f32 %v1130, 1.442695
        %v1251 = vpow.pop %v1250
        %v1252 = vmul.f32 %v1131, 1.442695
        %v1253 = vpow.pop %v1252
        %v1254 = vmul.f32 %v1132, 1.442695
        %v1255 = vpow.pop %v1254
        %v1256 = vmul.f32 %v1133, 1.442695
        %v1257 = vpow.pop %v1256
        %v1258 = vmul.f32 %v1134, 1.442695
        %v1259 = vpow.pop %v1258
        %v1260 = vmul.f32 %v1135, 1.442695
        %v1261 = vpow.pop %v1260
        %v1262 = vmul.f32 %v1136, 1.442695
        %v1263 = vpow.pop %v1262
        %v1264 = vmul.f32 %v1137, 1.442695
        %v1265 = vpow.pop %v1264
        %v1266 = vld [vmem:[#allocation5] sm:$0x1]
        %v1267 = vld [vmem:[#allocation5 + $0x1] sm:$0x1]
        %v1268 = vld [vmem:[#allocation5 + $0x2] sm:$0x1]
        %v1269 = vld [vmem:[#allocation5 + $0x3] sm:$0x1]
        %v1270 = vmul.f32 %v1055, %v1266
        %v1271 = vmul.f32 %v1057, %v1267
        %v1272 = vmul.f32 %v1059, %v1268
        %v1273 = vmul.f32 %v1061, %v1269
        %v1274 = vadd.f32 %v1139, %v1141
        %v1275 = vadd.f32 %v1274, %v1143
        %v1276 = vadd.f32 %v1275, %v1145
        %v1277 = vadd.f32 %v1276, %v1147
        %v1278 = vadd.f32 %v1277, %v1149
        %v1279 = vadd.f32 %v1278, %v1151
        %v1280 = vadd.f32 %v1279, %v1153
        %v1281 = vadd.f32 %v1280, %v1155
        %v1282 = vadd.f32 %v1281, %v1157
        %v1283 = vadd.f32 %v1282, %v1159
        %v1284 = vadd.f32 %v1283, %v1161
        %v1285 = vadd.f32 %v1284, %v1163
        %v1286 = vadd.f32 %v1285, %v1165
        %v1287 = vadd.f32 %v1286, %v1167
        %v1288 = vadd.f32 %v1287, %v1169
        %v1289 = vrot.slane %v1288, 4
        %v1290 = vadd.f32 %v1288, %v1289
        %v1291 = vrot.slane %v1290, 2
        %v1292 = vadd.f32 %v1290, %v1291
        %v1293 = vrot.slane %v1292, 1
        %v1294 = vadd.f32 %v1292, %v1293
        %v1295 = vadd.f32 %v1171, %v1173
        %v1296 = vadd.f32 %v1295, %v1175
        %v1297 = vadd.f32 %v1296, %v1177
        %v1298 = vadd.f32 %v1297, %v1179
        %v1299 = vadd.f32 %v1298, %v1181
        %v1300 = vadd.f32 %v1299, %v1183
        %v1301 = vadd.f32 %v1300, %v1185
        %v1302 = vadd.f32 %v1301, %v1187
        %v1303 = vadd.f32 %v1302, %v1189
        %v1304 = vadd.f32 %v1303, %v1191
        %v1305 = vadd.f32 %v1304, %v1193
        %v1306 = vadd.f32 %v1305, %v1195
        %v1307 = vadd.f32 %v1306, %v1197
        %v1308 = vadd.f32 %v1307, %v1199
        %v1309 = vadd.f32 %v1308, %v1201
        %v1310 = vrot.slane %v1309, 4
        %v1311 = vadd.f32 %v1309, %v1310
        %v1312 = vrot.slane %v1311, 2
        %v1313 = vadd.f32 %v1311, %v1312
        %v1314 = vrot.slane %v1313, 1
        %v1315 = vadd.f32 %v1313, %v1314
        %v1316 = vadd.f32 %v1203, %v1205
        %v1317 = vadd.f32 %v1316, %v1207
        %v1318 = vadd.f32 %v1317, %v1209
        %v1319 = vadd.f32 %v1318, %v1211
        %v1320 = vadd.f32 %v1319, %v1213
        %v1321 = vadd.f32 %v1320, %v1215
        %v1322 = vadd.f32 %v1321, %v1217
        %v1323 = vadd.f32 %v1322, %v1219
        %v1324 = vadd.f32 %v1323, %v1221
        %v1325 = vadd.f32 %v1324, %v1223
        %v1326 = vadd.f32 %v1325, %v1225
        %v1327 = vadd.f32 %v1326, %v1227
        %v1328 = vadd.f32 %v1327, %v1229
        %v1329 = vadd.f32 %v1328, %v1231
        %v1330 = vadd.f32 %v1329, %v1233
        %v1331 = vrot.slane %v1330, 4
        %v1332 = vadd.f32 %v1330, %v1331
        %v1333 = vrot.slane %v1332, 2
        %v1334 = vadd.f32 %v1332, %v1333
        %v1335 = vrot.slane %v1334, 1
        %v1336 = vadd.f32 %v1334, %v1335
        %v1337 = vadd.f32 %v1235, %v1237
        %v1338 = vadd.f32 %v1337, %v1239
        %v1339 = vadd.f32 %v1338, %v1241
        %v1340 = vadd.f32 %v1339, %v1243
        %v1341 = vadd.f32 %v1340, %v1245
        %v1342 = vadd.f32 %v1341, %v1247
        %v1343 = vadd.f32 %v1342, %v1249
        %v1344 = vadd.f32 %v1343, %v1251
        %v1345 = vadd.f32 %v1344, %v1253
        %v1346 = vadd.f32 %v1345, %v1255
        %v1347 = vadd.f32 %v1346, %v1257
        %v1348 = vadd.f32 %v1347, %v1259
        %v1349 = vadd.f32 %v1348, %v1261
        %v1350 = vadd.f32 %v1349, %v1263
        %v1351 = vadd.f32 %v1350, %v1265
        %v1352 = vrot.slane %v1351, 4
        %v1353 = vadd.f32 %v1351, %v1352
        %v1354 = vrot.slane %v1353, 2
        %v1355 = vadd.f32 %v1353, %v1354
        %v1356 = vrot.slane %v1355, 1
        %v1357 = vadd.f32 %v1355, %v1356
        %v1358 = vadd.f32 %v1270, %v1294
        %v1359 = vadd.f32 %v1271, %v1315
        %v1360 = vadd.f32 %v1272, %v1336
        %v1361 = vadd.f32 %v1273, %v1357
        %1362 = vst [vmem:[#allocation5] sm:$0x1] %v1358
        %1363 = vst [vmem:[#allocation5 + $0x1] sm:$0x1] %v1359
        %1364 = vst [vmem:[#allocation5 + $0x2] sm:$0x1] %v1360
        %1365 = vst [vmem:[#allocation5 + $0x3] sm:$0x1] %v1361
        %1366 = vst [vmem:[#allocation4] sm:$0x1] %v1046
        %1367 = vst [vmem:[#allocation4 + $0x1] sm:$0x1] %v1047
        %1368 = vst [vmem:[#allocation4 + $0x2] sm:$0x1] %v1048
        %1369 = vst [vmem:[#allocation4 + $0x3] sm:$0x1] %v1049
        %v1370 = vpack.c.bf16 %v1139, %v1139
        %v1371 = vpack.c.bf16 %v1141, %v1141
        %v1372 = vpack.c.bf16 %v1143, %v1143
        %v1373 = vpack.c.bf16 %v1145, %v1145
        %v1374 = vpack.c.bf16 %v1147, %v1147
        %v1375 = vpack.c.bf16 %v1149, %v1149
        %v1376 = vpack.c.bf16 %v1151, %v1151
        %v1377 = vpack.c.bf16 %v1153, %v1153
        %v1378 = vpack.c.bf16 %v1155, %v1155
        %v1379 = vpack.c.bf16 %v1157, %v1157
        %v1380 = vpack.c.bf16 %v1159, %v1159
        %v1381 = vpack.c.bf16 %v1161, %v1161
        %v1382 = vpack.c.bf16 %v1163, %v1163
        %v1383 = vpack.c.bf16 %v1165, %v1165
        %v1384 = vpack.c.bf16 %v1167, %v1167
        %v1385 = vpack.c.bf16 %v1169, %v1169
        %v1386 = vpack.c.bf16 %v1171, %v1171
        %v1387 = vpack.c.bf16 %v1173, %v1173
        %v1388 = vpack.c.bf16 %v1175, %v1175
        %v1389 = vpack.c.bf16 %v1177, %v1177
        %v1390 = vpack.c.bf16 %v1179, %v1179
        %v1391 = vpack.c.bf16 %v1181, %v1181
        %v1392 = vpack.c.bf16 %v1183, %v1183
        %v1393 = vpack.c.bf16 %v1185, %v1185
        %v1394 = vpack.c.bf16 %v1187, %v1187
        %v1395 = vpack.c.bf16 %v1189, %v1189
        %v1396 = vpack.c.bf16 %v1191, %v1191
        %v1397 = vpack.c.bf16 %v1193, %v1193
        %v1398 = vpack.c.bf16 %v1195, %v1195
        %v1399 = vpack.c.bf16 %v1197, %v1197
        %v1400 = vpack.c.bf16 %v1199, %v1199
        %v1401 = vpack.c.bf16 %v1201, %v1201
        %v1402 = vpack.c.bf16 %v1203, %v1203
        %v1403 = vpack.c.bf16 %v1205, %v1205
        %v1404 = vpack.c.bf16 %v1207, %v1207
        %v1405 = vpack.c.bf16 %v1209, %v1209
        %v1406 = vpack.c.bf16 %v1211, %v1211
        %v1407 = vpack.c.bf16 %v1213, %v1213
        %v1408 = vpack.c.bf16 %v1215, %v1215
        %v1409 = vpack.c.bf16 %v1217, %v1217
        %v1410 = vpack.c.bf16 %v1219, %v1219
        %v1411 = vpack.c.bf16 %v1221, %v1221
        %v1412 = vpack.c.bf16 %v1223, %v1223
        %v1413 = vpack.c.bf16 %v1225, %v1225
        %v1414 = vpack.c.bf16 %v1227, %v1227
        %v1415 = vpack.c.bf16 %v1229, %v1229
        %v1416 = vpack.c.bf16 %v1231, %v1231
        %v1417 = vpack.c.bf16 %v1233, %v1233
        %v1418 = vpack.c.bf16 %v1235, %v1235
        %v1419 = vpack.c.bf16 %v1237, %v1237
        %v1420 = vpack.c.bf16 %v1239, %v1239
        %v1421 = vpack.c.bf16 %v1241, %v1241
        %v1422 = vpack.c.bf16 %v1243, %v1243
        %v1423 = vpack.c.bf16 %v1245, %v1245
        %v1424 = vpack.c.bf16 %v1247, %v1247
        %v1425 = vpack.c.bf16 %v1249, %v1249
        %v1426 = vpack.c.bf16 %v1251, %v1251
        %v1427 = vpack.c.bf16 %v1253, %v1253
        %v1428 = vpack.c.bf16 %v1255, %v1255
        %v1429 = vpack.c.bf16 %v1257, %v1257
        %v1430 = vpack.c.bf16 %v1259, %v1259
        %v1431 = vpack.c.bf16 %v1261, %v1261
        %v1432 = vpack.c.bf16 %v1263, %v1263
        %v1433 = vpack.c.bf16 %v1265, %v1265
        %v1436 = vunpack.c.l.b16 %v537
        %v1437 = vunpack.c.l.b16 %v538
        %v1438 = vpack.c.b16 %v1437, %v1436
        %v1456 = vunpack.c.l.b16 %v1370
        %v1457 = vunpack.c.l.b16 %v1371
        %v1458 = vunpack.c.l.b16 %v1372
        %v1459 = vunpack.c.l.b16 %v1373
        %v1460 = vunpack.c.l.b16 %v1374
        %v1461 = vunpack.c.l.b16 %v1375
        %v1462 = vunpack.c.l.b16 %v1376
        %v1463 = vunpack.c.l.b16 %v1377
        %v1464 = vunpack.c.l.b16 %v1378
        %v1465 = vunpack.c.l.b16 %v1379
        %v1466 = vunpack.c.l.b16 %v1380
        %v1467 = vunpack.c.l.b16 %v1381
        %v1468 = vunpack.c.l.b16 %v1382
        %v1469 = vunpack.c.l.b16 %v1383
        %v1470 = vunpack.c.l.b16 %v1384
        %v1471 = vunpack.c.l.b16 %v1385
        %v1472 = vpack.c.b16 %v1457, %v1456
        %v1473 = vpack.c.b16 %v1459, %v1458
        %v1474 = vpack.c.b16 %v1461, %v1460
        %v1475 = vpack.c.b16 %v1463, %v1462
        %v1476 = vpack.c.b16 %v1465, %v1464
        %v1477 = vpack.c.b16 %v1467, %v1466
        %v1478 = vpack.c.b16 %v1469, %v1468
        %v1479 = vpack.c.b16 %v1471, %v1470
        %1488 = vmatpush.bf16.msra.mxu0 %v1479
        %1489 = vmatpush.bf16.msra.mxu0 %v1478
        %1490 = vmatpush.bf16.msra.mxu0 %v1477
        %1491 = vmatpush.bf16.msra.mxu0 %v1476
        %1492 = vmatpush.bf16.msra.mxu0 %v1475
        %1493 = vmatpush.bf16.msra.mxu0 %v1474
        %1494 = vmatpush.bf16.msra.mxu0 %v1473
        %1495 = vmatpush.bf16.msra.mxu0 %v1472
        %1496 = vmatmul.bf16.gmra.mxu0 %v1438
        %v1497 = vpop.f32.mrf.mxu0
        %v1498 = vadd.f32 0.0, %v1497
        %v1499 = vpop.f32.mrf.mxu0
        %v1500 = vadd.f32 0.0, %v1499
        %1501 = vdwg.mxu0
        %v1504 = vunpack.c.l.b16 %v539
        %v1505 = vunpack.c.l.b16 %v540
        %v1506 = vpack.c.b16 %v1505, %v1504
        %v1524 = vunpack.c.l.b16 %v1386
        %v1525 = vunpack.c.l.b16 %v1387
        %v1526 = vunpack.c.l.b16 %v1388
        %v1527 = vunpack.c.l.b16 %v1389
        %v1528 = vunpack.c.l.b16 %v1390
        %v1529 = vunpack.c.l.b16 %v1391
        %v1530 = vunpack.c.l.b16 %v1392
        %v1531 = vunpack.c.l.b16 %v1393
        %v1532 = vunpack.c.l.b16 %v1394
        %v1533 = vunpack.c.l.b16 %v1395
        %v1534 = vunpack.c.l.b16 %v1396
        %v1535 = vunpack.c.l.b16 %v1397
        %v1536 = vunpack.c.l.b16 %v1398
        %v1537 = vunpack.c.l.b16 %v1399
        %v1538 = vunpack.c.l.b16 %v1400
        %v1539 = vunpack.c.l.b16 %v1401
        %v1540 = vpack.c.b16 %v1525, %v1524
        %v1541 = vpack.c.b16 %v1527, %v1526
        %v1542 = vpack.c.b16 %v1529, %v1528
        %v1543 = vpack.c.b16 %v1531, %v1530
        %v1544 = vpack.c.b16 %v1533, %v1532
        %v1545 = vpack.c.b16 %v1535, %v1534
        %v1546 = vpack.c.b16 %v1537, %v1536
        %v1547 = vpack.c.b16 %v1539, %v1538
        %1556 = vmatpush.bf16.msra.mxu0 %v1547
        %1557 = vmatpush.bf16.msra.mxu0 %v1546
        %1558 = vmatpush.bf16.msra.mxu0 %v1545
        %1559 = vmatpush.bf16.msra.mxu0 %v1544
        %1560 = vmatpush.bf16.msra.mxu0 %v1543
        %1561 = vmatpush.bf16.msra.mxu0 %v1542
        %1562 = vmatpush.bf16.msra.mxu0 %v1541
        %1563 = vmatpush.bf16.msra.mxu0 %v1540
        %1564 = vmatmul.bf16.gmra.mxu0 %v1506
        %v1565 = vpop.f32.mrf.mxu0
        %v1566 = vadd.f32 0.0, %v1565
        %v1567 = vpop.f32.mrf.mxu0
        %v1568 = vadd.f32 0.0, %v1567
        %1569 = vdwg.mxu0
        %v1572 = vunpack.c.l.b16 %v541
        %v1573 = vunpack.c.l.b16 %v542
        %v1574 = vpack.c.b16 %v1573, %v1572
        %v1592 = vunpack.c.l.b16 %v1402
        %v1593 = vunpack.c.l.b16 %v1403
        %v1594 = vunpack.c.l.b16 %v1404
        %v1595 = vunpack.c.l.b16 %v1405
        %v1596 = vunpack.c.l.b16 %v1406
        %v1597 = vunpack.c.l.b16 %v1407
        %v1598 = vunpack.c.l.b16 %v1408
        %v1599 = vunpack.c.l.b16 %v1409
        %v1600 = vunpack.c.l.b16 %v1410
        %v1601 = vunpack.c.l.b16 %v1411
        %v1602 = vunpack.c.l.b16 %v1412
        %v1603 = vunpack.c.l.b16 %v1413
        %v1604 = vunpack.c.l.b16 %v1414
        %v1605 = vunpack.c.l.b16 %v1415
        %v1606 = vunpack.c.l.b16 %v1416
        %v1607 = vunpack.c.l.b16 %v1417
        %v1608 = vpack.c.b16 %v1593, %v1592
        %v1609 = vpack.c.b16 %v1595, %v1594
        %v1610 = vpack.c.b16 %v1597, %v1596
        %v1611 = vpack.c.b16 %v1599, %v1598
        %v1612 = vpack.c.b16 %v1601, %v1600
        %v1613 = vpack.c.b16 %v1603, %v1602
        %v1614 = vpack.c.b16 %v1605, %v1604
        %v1615 = vpack.c.b16 %v1607, %v1606
        %1624 = vmatpush.bf16.msra.mxu0 %v1615
        %1625 = vmatpush.bf16.msra.mxu0 %v1614
        %1626 = vmatpush.bf16.msra.mxu0 %v1613
        %1627 = vmatpush.bf16.msra.mxu0 %v1612
        %1628 = vmatpush.bf16.msra.mxu0 %v1611
        %1629 = vmatpush.bf16.msra.mxu0 %v1610
        %1630 = vmatpush.bf16.msra.mxu0 %v1609
        %1631 = vmatpush.bf16.msra.mxu0 %v1608
        %1632 = vmatmul.bf16.gmra.mxu0 %v1574
        %v1633 = vpop.f32.mrf.mxu0
        %v1634 = vadd.f32 0.0, %v1633
        %v1635 = vpop.f32.mrf.mxu0
        %v1636 = vadd.f32 0.0, %v1635
        %1637 = vdwg.mxu0
        %v1640 = vunpack.c.l.b16 %v543
        %v1641 = vunpack.c.l.b16 %v544
        %v1642 = vpack.c.b16 %v1641, %v1640
        %v1660 = vunpack.c.l.b16 %v1418
        %v1661 = vunpack.c.l.b16 %v1419
        %v1662 = vunpack.c.l.b16 %v1420
        %v1663 = vunpack.c.l.b16 %v1421
        %v1664 = vunpack.c.l.b16 %v1422
        %v1665 = vunpack.c.l.b16 %v1423
        %v1666 = vunpack.c.l.b16 %v1424
        %v1667 = vunpack.c.l.b16 %v1425
        %v1668 = vunpack.c.l.b16 %v1426
        %v1669 = vunpack.c.l.b16 %v1427
        %v1670 = vunpack.c.l.b16 %v1428
        %v1671 = vunpack.c.l.b16 %v1429
        %v1672 = vunpack.c.l.b16 %v1430
        %v1673 = vunpack.c.l.b16 %v1431
        %v1674 = vunpack.c.l.b16 %v1432
        %v1675 = vunpack.c.l.b16 %v1433
        %v1676 = vpack.c.b16 %v1661, %v1660
        %v1677 = vpack.c.b16 %v1663, %v1662
        %v1678 = vpack.c.b16 %v1665, %v1664
        %v1679 = vpack.c.b16 %v1667, %v1666
        %v1680 = vpack.c.b16 %v1669, %v1668
        %v1681 = vpack.c.b16 %v1671, %v1670
        %v1682 = vpack.c.b16 %v1673, %v1672
        %v1683 = vpack.c.b16 %v1675, %v1674
        %1692 = vmatpush.bf16.msra.mxu0 %v1683
        %1693 = vmatpush.bf16.msra.mxu0 %v1682
        %1694 = vmatpush.bf16.msra.mxu0 %v1681
        %1695 = vmatpush.bf16.msra.mxu0 %v1680
        %1696 = vmatpush.bf16.msra.mxu0 %v1679
        %1697 = vmatpush.bf16.msra.mxu0 %v1678
        %1698 = vmatpush.bf16.msra.mxu0 %v1677
        %1699 = vmatpush.bf16.msra.mxu0 %v1676
        %1700 = vmatmul.bf16.gmra.mxu0 %v1642
        %v1701 = vpop.f32.mrf.mxu0
        %v1702 = vadd.f32 0.0, %v1701
        %v1703 = vpop.f32.mrf.mxu0
        %v1704 = vadd.f32 0.0, %v1703
        %1705 = vdwg.mxu0
        %v1706 = vld [vmem:[#allocation3] sm:$0xff]
        %v1707 = vld [vmem:[#allocation3 + $0x8] sm:$0xff]
        %v1708 = vld [vmem:[#allocation3 + $0x10] sm:$0xff]
        %v1709 = vld [vmem:[#allocation3 + $0x18] sm:$0xff]
        %v1710 = vld [vmem:[#allocation3 + $0x20] sm:$0xff]
        %v1711 = vld [vmem:[#allocation3 + $0x28] sm:$0xff]
        %v1712 = vld [vmem:[#allocation3 + $0x30] sm:$0xff]
        %v1713 = vld [vmem:[#allocation3 + $0x38] sm:$0xff]
        %v1718 = vperm.slane %v1055, 0
        %v1719 = vperm.slane %v1057, 0
        %v1720 = vperm.slane %v1059, 0
        %v1721 = vperm.slane %v1061, 0
        %v1726 = vmul.f32 %v1718, %v1706
        %v1727 = vmul.f32 %v1718, %v1707
        %v1728 = vmul.f32 %v1719, %v1708
        %v1729 = vmul.f32 %v1719, %v1709
        %v1730 = vmul.f32 %v1720, %v1710
        %v1731 = vmul.f32 %v1720, %v1711
        %v1732 = vmul.f32 %v1721, %v1712
        %v1733 = vmul.f32 %v1721, %v1713
        %v1734 = vadd.f32 %v1726, %v1498
        %v1735 = vadd.f32 %v1727, %v1500
        %v1736 = vadd.f32 %v1728, %v1566
        %v1737 = vadd.f32 %v1729, %v1568
        %v1738 = vadd.f32 %v1730, %v1634
        %v1739 = vadd.f32 %v1731, %v1636
        %v1740 = vadd.f32 %v1732, %v1702
        %v1741 = vadd.f32 %v1733, %v1704
        %1742 = vst [vmem:[#allocation3] sm:$0xff] %v1734
        %1743 = vst [vmem:[#allocation3 + $0x8] sm:$0xff] %v1735
        %1744 = vst [vmem:[#allocation3 + $0x10] sm:$0xff] %v1736
        %1745 = vst [vmem:[#allocation3 + $0x18] sm:$0xff] %v1737
        %1746 = vst [vmem:[#allocation3 + $0x20] sm:$0xff] %v1738
        %1747 = vst [vmem:[#allocation3 + $0x28] sm:$0xff] %v1739
        %1748 = vst [vmem:[#allocation3 + $0x30] sm:$0xff] %v1740
        %1749 = vst [vmem:[#allocation3 + $0x38] sm:$0xff] %v1741
        %p1750 = scmp.eq.s32.totalorder %s33, 4
        // Predicated region
        $region57: #{tpu_custom_call.1} parent=43 // pred_check
          %p1751 = pneg %p1750
        $region58: #{tpu_custom_call.1} parent=43 // pred_check_branch
          %1753 = sbr.rel (%p1751) target = $region60
        $region59: #{tpu_custom_call.1} parent=43 // pred_region
          %v1754 = vld [vmem:[#allocation5] sm:$0x1]
          %v1755 = vld [vmem:[#allocation5 + $0x1] sm:$0x1]
          %v1756 = vld [vmem:[#allocation5 + $0x2] sm:$0x1]
          %v1757 = vld [vmem:[#allocation5 + $0x3] sm:$0x1]
          %v1758 = vrcp.pop %v1754
          %v1759 = vrcp.pop %v1755
          %v1760 = vrcp.pop %v1756
          %v1761 = vrcp.pop %v1757
          %v1762 = vld [vmem:[#allocation3] sm:$0xff]
          %v1763 = vld [vmem:[#allocation3 + $0x8] sm:$0xff]
          %v1764 = vld [vmem:[#allocation3 + $0x10] sm:$0xff]
          %v1765 = vld [vmem:[#allocation3 + $0x18] sm:$0xff]
          %v1766 = vld [vmem:[#allocation3 + $0x20] sm:$0xff]
          %v1767 = vld [vmem:[#allocation3 + $0x28] sm:$0xff]
          %v1768 = vld [vmem:[#allocation3 + $0x30] sm:$0xff]
          %v1769 = vld [vmem:[#allocation3 + $0x38] sm:$0xff]
          %v1774 = vperm.slane %v1758, 0
          %v1775 = vperm.slane %v1759, 0
          %v1776 = vperm.slane %v1760, 0
          %v1777 = vperm.slane %v1761, 0
          %v1782 = vmul.f32 %v1762, %v1774
          %v1783 = vmul.f32 %v1763, %v1774
          %v1784 = vmul.f32 %v1764, %v1775
          %v1785 = vmul.f32 %v1765, %v1775
          %v1786 = vmul.f32 %v1766, %v1776
          %v1787 = vmul.f32 %v1767, %v1776
          %v1788 = vmul.f32 %v1768, %v1777
          %v1789 = vmul.f32 %v1769, %v1777
          %v1790 = vld [vmem:[%s4] sm:$0xf]
          %v1791 = vld [vmem:[%s4 + $0x4] sm:$0xf]
          %v1792 = vld [vmem:[%s4 + $0x8] sm:$0xf]
          %v1793 = vld [vmem:[%s4 + $0xc] sm:$0xf]
          %v1794 = vld [vmem:[%s4 + $0x10] sm:$0xf]
          %v1795 = vld [vmem:[%s4 + $0x14] sm:$0xf]
          %v1796 = vld [vmem:[%s4 + $0x18] sm:$0xf]
          %v1797 = vld [vmem:[%s4 + $0x1c] sm:$0xf]
          %v1798 = vpack.c.bf16 %v1783, %v1782
          %v1799 = vpack.c.bf16 %v1785, %v1784
          %v1800 = vpack.c.bf16 %v1787, %v1786
          %v1801 = vpack.c.bf16 %v1789, %v1788
          %v1802 = vld [vmem:[%s5] sm:$0xff]
          %v1803 = vld [vmem:[%s5 + $0x8] sm:$0xff]
          %v1804 = vld [vmem:[%s5 + $0x10] sm:$0xff]
          %v1805 = vld [vmem:[%s5 + $0x18] sm:$0xff]
          %v1806 = vld [vmem:[%s5 + $0x20] sm:$0xff]
          %v1807 = vld [vmem:[%s5 + $0x28] sm:$0xff]
          %v1808 = vld [vmem:[%s5 + $0x30] sm:$0xff]
          %v1809 = vld [vmem:[%s5 + $0x38] sm:$0xff]
          %1811 = vset.pattern.permute.xlu0 0
          %1812 = vperm.xlu0 %1811, %v1802
          %v1813 = vpop.permute.xlu0 %1812
          %1816 = vset.pattern.permute.xlu0 0
          %1817 = vperm.xlu0 %1816, %v1803
          %v1818 = vpop.permute.xlu0 %1817
          %1821 = vset.pattern.permute.xlu0 0
          %1822 = vperm.xlu0 %1821, %v1804
          %v1823 = vpop.permute.xlu0 %1822
          %1826 = vset.pattern.permute.xlu0 0
          %1827 = vperm.xlu0 %1826, %v1805
          %v1828 = vpop.permute.xlu0 %1827
          %1831 = vset.pattern.permute.xlu0 0
          %1832 = vperm.xlu0 %1831, %v1806
          %v1833 = vpop.permute.xlu0 %1832
          %1836 = vset.pattern.permute.xlu0 0
          %1837 = vperm.xlu0 %1836, %v1807
          %v1838 = vpop.permute.xlu0 %1837
          %1841 = vset.pattern.permute.xlu0 0
          %1842 = vperm.xlu0 %1841, %v1808
          %v1843 = vpop.permute.xlu0 %1842
          %1846 = vset.pattern.permute.xlu0 0
          %1847 = vperm.xlu0 %1846, %v1809
          %v1848 = vpop.permute.xlu0 %1847
          %v1858 = vunpack.c.l.b16 %v1790
          %v1859 = vunpack.c.l.b16 %v1791
          %v1860 = vunpack.c.l.b16 %v1792
          %v1861 = vunpack.c.l.b16 %v1793
          %v1862 = vunpack.c.l.b16 %v1794
          %v1863 = vunpack.c.l.b16 %v1795
          %v1864 = vunpack.c.l.b16 %v1796
          %v1865 = vunpack.c.l.b16 %v1797
          %v1866 = vpack.c.b16 %v1859, %v1858
          %v1867 = vpack.c.b16 %v1861, %v1860
          %v1868 = vpack.c.b16 %v1863, %v1862
          %v1869 = vpack.c.b16 %v1865, %v1864
          %vm1870 = vcmask 523264
          %v1872 = vsel %vm1870, %v1866, 0
          %v1875 = vsel %vm1870, %v1867, 0
          %v1878 = vsel %vm1870, %v1868, 0
          %v1881 = vsel %vm1870, %v1869, 0
          %1883 = vmatpush.bf16.msra.mxu0 0
          %1884 = vmatpush.bf16.msra.mxu0 0
          %1885 = vmatpush.bf16.msra.mxu0 0
          %1886 = vmatpush.bf16.msra.mxu0 0
          %1887 = vmatpush.bf16.msra.mxu0 %v1801
          %1888 = vmatpush.bf16.msra.mxu0 %v1800
          %1889 = vmatpush.bf16.msra.mxu0 %v1799
          %1890 = vmatpush.bf16.msra.mxu0 %v1798
          %1891 = vmatmul.bf16.gmra.mxu0 %v1872
          %v1892 = vpop.f32.mrf.mxu0
          %v1893 = vadd.f32 %v1813, %v1892
          %v1894 = vpop.f32.mrf.mxu0
          %v1895 = vadd.f32 %v1818, %v1894
          %1896 = vmatmul.bf16.gmra.mxu0 %v1875
          %v1897 = vpop.f32.mrf.mxu0
          %v1898 = vadd.f32 %v1823, %v1897
          %v1899 = vpop.f32.mrf.mxu0
          %v1900 = vadd.f32 %v1828, %v1899
          %1901 = vmatmul.bf16.gmra.mxu0 %v1878
          %v1902 = vpop.f32.mrf.mxu0
          %v1903 = vadd.f32 %v1833, %v1902
          %v1904 = vpop.f32.mrf.mxu0
          %v1905 = vadd.f32 %v1838, %v1904
          %1906 = vmatmul.bf16.gmra.mxu0 %v1881
          %v1907 = vpop.f32.mrf.mxu0
          %v1908 = vadd.f32 %v1843, %v1907
          %v1909 = vpop.f32.mrf.mxu0
          %v1910 = vadd.f32 %v1848, %v1909
          %1911 = vdwg.mxu0
          %1912 = vst [vmem:[%s340] sm:$0xff] %v1893
          %1913 = vst [vmem:[%s340 + $0x8] sm:$0xff] %v1895
          %1914 = vst [vmem:[%s340 + $0x10] sm:$0xff] %v1898
          %1915 = vst [vmem:[%s340 + $0x18] sm:$0xff] %v1900
          %1916 = vst [vmem:[%s340 + $0x20] sm:$0xff] %v1903
          %1917 = vst [vmem:[%s340 + $0x28] sm:$0xff] %v1905
          %1918 = vst [vmem:[%s340 + $0x30] sm:$0xff] %v1908
          %1919 = vst [vmem:[%s340 + $0x38] sm:$0xff] %v1910
        $region60: #{tpu_custom_call.1} parent=43 // pred_fallthru
          _
        %s1920 = sand.u32 %s195, 1
        %s1921 = scalar_lea.sflag [#allocation8], %s1920
        %s1922 = sand.u32 %s195, 1
        %s1923 = smul.addr %s1922, 64
        %s1924 = scalar_lea.vmem [#allocation11], %s1923
        // Predicated region
        $region61: #{tpu_custom_call.1} parent=43 // pred_check
          %p1925 = pneg %p205
        $region62: #{tpu_custom_call.1} parent=43 // pred_check_branch
          %1927 = sbr.rel (%p1925) target = $region64
        $region63: #{tpu_custom_call.1} parent=43 // pred_region
          %1929 = vsyncadd %s1921, 0
          %s1930 = smul.addr %s31, 24
          %s1931 = sadd.s32 %s32, %s1930
          %s1932 = smul.addr %s1931, 8
          %s1933 = scalar_lea.hbm %s6, %s1932
          %s1934 = sshll.u32 %s1924, 4
          %s1935 = int_to_ptr.vmem [resolvable:$true] %s1934
          %s1936 = sshll.u32 %s1933, 4
          %s1937 = int_to_ptr.hbm [resolvable:$true] %s1936
          %1942 = dma.vmem_to_hbm [thread:$0]  %s1935, 1024, %s1937, %s1921, 128, 384, 8
        $region64: #{tpu_custom_call.1} parent=43 // pred_fallthru
          _
      $region44: #{tpu_custom_call.1} parent=5 // pred_fallthru
        _
      %p1943 = scmp.le.s32.totalorder 2, %s21
      // Predicated region
      $region65: #{tpu_custom_call.1} parent=5 // pred_check
        %p1944 = pneg %p1943
      $region66: #{tpu_custom_call.1} parent=5 // pred_check_branch
        %1946 = sbr.rel (%p1944) target = $region68
      $region67: #{tpu_custom_call.1} parent=5 // pred_region
        %s1947 = ssub.s32 %s21, 2
        // Predicated region
        $region69: #{tpu_custom_call.1} parent=67 // pred_check
          %p1948 = pneg %p211
        $region70: #{tpu_custom_call.1} parent=67 // pred_check_branch
          %1950 = sbr.rel (%p1948) target = $region72
        $region71: #{tpu_custom_call.1} parent=67 // pred_region
          %s1951 = sand.u32 %s196, 1
          %s1952 = scalar_lea.sflag [#allocation8], %s1951
          %s1953 = sand.u32 %s196, 1
          %s1954 = smul.addr %s1953, 64
          %s1955 = scalar_lea.vmem [#allocation11], %s1954
          %1957 = dma.done %s1952, 1024
        $region72: #{tpu_custom_call.1} parent=67 // pred_fallthru
          _
      $region68: #{tpu_custom_call.1} parent=5 // pred_fallthru
        _
    $region6: #{tpu_custom_call.1} parent=1 // loop_footer
      %s25 = sadd.s32 1, %s21
    $region7: #{tpu_custom_call.1} parent=1 // loop_footer_branch
      %20 = sbr.rel target = $region3
    $region8: #{tpu_custom_call.1} parent=1 // loop_exit
      _
    %1958 = vsyncpa [#allocation7], 1
    %s1959 = scalar_lea.sflag [#allocation7], 1
    %1960 = vsyncpa %s1959, 1
    %1961 = vsyncpa [#allocation10], 1
    %s1962 = scalar_lea.sflag [#allocation10], 1
    %1963 = vsyncpa %s1962, 1
    %1964 = vsyncpa [#allocation8], 1
    %s1965 = scalar_lea.sflag [#allocation8], 1
    %1966 = vsyncpa %s1965, 1

</llo_original>
